<compile_context>
chip_gen: v5e
topology: v5e:2x2
jax: 0.10.0
libtpu: 0.0.40
codegen_flags: <defaults>
</compile_context>

<pallas_src>
import jax
import jax.numpy as jnp
from jax.experimental import pallas as pl
from jax.experimental.pallas import tpu as pltpu

# ----------------------------- sizes (synthetic) -----------------------------
N_ATOMS, N_BONDS = 16, 24
MAX_NB = 4
ATOM_FDIM, BOND_FDIM = 48, 64
HIDDEN = 32
N_MT_HEADS = 2                    # number of Head modules inside each MTBlock
MHA_HEADS = 2                     # heads inside MultiHeadedAttention
D_K = HIDDEN // MHA_HEADS
LN_EPS = 1e-5

# padded common slab: rows to a multiple of 8 (sublane), features to the max fdim
N_PAD = ((max(N_ATOMS, N_BONDS) + 7) // 8) * 8
F_PAD = ((max(ATOM_FDIM, BOND_FDIM) + 7) // 8) * 8


# --------------------------------- helpers -----------------------------------
def _ln(x, gamma, beta):
    mu = jnp.mean(x, axis=-1, keepdims=True)
    var = jnp.mean(jnp.square(x - mu), axis=-1, keepdims=True)
    return (x - mu) * jax.lax.rsqrt(var + LN_EPS) * gamma + beta


def _block_diag(*mats):
    rows = []
    n = len(mats)
    for i, m in enumerate(mats):
        row = [m if j == i else jnp.zeros((m.shape[0], mats[j].shape[1]), m.dtype)
               for j in range(n)]
        rows.append(jnp.concatenate(row, axis=1))
    return jnp.concatenate(rows, axis=0)


# --------------------------- fused dual-MTBlock kernel -------------------------
# grid = (2,)  -> program 0: node block on padded f_atoms, program 1: edge block
# on padded f_bonds.  All parameters arrive stacked along a leading axis of 2
# and are selected by the index_map; every intermediate stays in VMEM.
def _mtblock_kernel(feats_ref, agg_ref, wi_ref, wlin_ref, bqkv_ref,
                    wmha_ref, wfold_ref, vecs_ref, o_ref):
    f32 = jnp.float32
    H = HIDDEN

    vecs = vecs_ref[0]                                        # [9, H]
    b_i, g_i, beta_i = vecs[0:1], vecs[1:2], vecs[2:3]
    b_fold, g_o, beta_o = vecs[3:4], vecs[4:5], vecs[5:6]
    b_q, b_k, b_v = vecs[6:7], vecs[7:8], vecs[8:9]

    # (1) MTBlock input transform: LayerNorm(ReLU(W_i @ feats))
    x = jnp.dot(feats_ref[0], wi_ref[0], preferred_element_type=f32) + b_i
    x = _ln(jnp.maximum(x, 0.0), g_i, beta_i)                 # [N_PAD, H]

    # (2) neighbor aggregation as a dense matmul with the precomputed one-hot
    #     matrix (exact same sums as index_select_ND(...).sum(1) on valid rows).
    msg = jnp.dot(agg_ref[0], x, preferred_element_type=f32)  # [N_PAD, H]

    # (3) all per-MT-head q/k/v linears + residual in ONE matmul:
    #     qkv = ReLU([msg | x] @ [[w_qkv], [I I I I I I]] + b)
    #     column layout: [q_mt0 | q_mt1 | k_mt0 | k_mt1 | v_mt0 | v_mt1]
    mx = jnp.concatenate([msg, x], axis=-1)                   # [N_PAD, 2H]
    qkv = jnp.maximum(
        jnp.dot(mx, wlin_ref[0], preferred_element_type=f32) + bqkv_ref[0], 0.0)

    # (4) MHA q/k/v projections: dense per-slot [H,H] matmuls (no block-diag zeros)
    wmha = wmha_ref[0]                                        # [3H, H]
    wq, wk, wv = wmha[0:H], wmha[H:2 * H], wmha[2 * H:3 * H]
    qp = [jnp.dot(qkv[:, s * H:(s + 1) * H], wq, preferred_element_type=f32) + b_q
          for s in range(N_MT_HEADS)]
    kp = [jnp.dot(qkv[:, (N_MT_HEADS + s) * H:(N_MT_HEADS + s + 1) * H], wk,
                  preferred_element_type=f32) + b_k
          for s in range(N_MT_HEADS)]
    vp = [jnp.dot(qkv[:, (2 * N_MT_HEADS + s) * H:(2 * N_MT_HEADS + s + 1) * H], wv,
                  preferred_element_type=f32) + b_v
          for s in range(N_MT_HEADS)]

    # (5)+(6) tiny attention over the MT-slot axis (len 2) per MHA head, with the
    #     output accumulated straight into row-slices of the folded out-projection
    #     (MHA out-proj and W_o were folded in glue) -> no lane concats.
    scale = 1.0 / float(D_K) ** 0.5
    wfold = wfold_ref[0]                                      # [2H, H]
    y = jnp.zeros_like(x)                                     # [N_PAD, H]
    for m in range(MHA_HEADS):
        lo = m * D_K
        k_m = [kp[j][:, lo:lo + D_K] for j in range(N_MT_HEADS)]   # hoisted
        v_m = [vp[j][:, lo:lo + D_K] for j in range(N_MT_HEADS)]   # hoisted
        for mt in range(N_MT_HEADS):
            q_m = qp[mt][:, lo:lo + D_K]
            scores = [jnp.sum(q_m * k_m[j], axis=-1, keepdims=True) * scale
                      for j in range(N_MT_HEADS)]
            mx_s = scores[0]
            for s_ in scores[1:]:
                mx_s = jnp.maximum(mx_s, s_)
            exps = [jnp.exp(s_ - mx_s) for s_ in scores]
            denom = exps[0]
            for e_ in exps[1:]:
                denom = denom + e_
            inv = 1.0 / denom                 # exact divide on [N,1]: ~free, tight parity
            out_p = (exps[0] * inv) * v_m[0]
            for j in range(1, N_MT_HEADS):
                out_p = out_p + (exps[j] * inv) * v_m[j]      # [N_PAD, D_K]
            r0 = mt * H + lo
            y = y + jnp.dot(out_p, wfold[r0:r0 + D_K, :], preferred_element_type=f32)
    y = y + b_fold
    o_ref[...] = _ln(y, g_o, beta_o).astype(o_ref.dtype)


# ------------------------------- call wrapper ---------------------------------
def _stacked_spec(shape):
    nzeros = len(shape) - 1
    return pl.BlockSpec((1,) + tuple(shape[1:]),
                        lambda i, _n=nzeros: (i,) + (0,) * _n)


def _fused_forward(packed, feats, agg):
    ins = (feats, agg, packed["wi"], packed["w_lin"], packed["b_qkv"],
           packed["w_mha"], packed["w_fold"], packed["vecs"])
    out_shape = (2 * N_PAD, HIDDEN)
    return pl.pallas_call(
        _mtblock_kernel,
        out_shape=jax.ShapeDtypeStruct(out_shape, jnp.float32),
        grid=(2,),
        in_specs=[_stacked_spec(a.shape) for a in ins],
        out_specs=pl.BlockSpec((N_PAD, HIDDEN), lambda i: (i, 0)),
        compiler_params=pltpu.CompilerParams(
            dimension_semantics=("parallel",)),
    )(*ins)


# -------------------------- JAX glue: packing & indices ------------------------
def _agg_matrix_atom(a2a, n_atoms):
    # M[i, j] = #{k : a2a[i, k] == j}   ->   M @ x == index_select_ND(x, a2a).sum(1)
    return jax.nn.one_hot(a2a, n_atoms, dtype=jnp.float32).sum(axis=1)


def _agg_matrix_bond(a2b, b2a, b2revb, n_atoms, n_bonds):
    a_ab = jax.nn.one_hot(a2b, n_bonds, dtype=jnp.float32).sum(axis=1)   # [n_atoms, n_bonds]
    s_ba = jax.nn.one_hot(b2a, n_atoms, dtype=jnp.float32)               # [n_bonds, n_atoms]
    s_rev = jax.nn.one_hot(b2revb, n_bonds, dtype=jnp.float32)           # [n_bonds, n_bonds]
    return s_ba @ a_ab - s_rev                                           # msg = M @ f_bonds_h


def _pack_block_params(p, in_dim_pad):
    heads = p["heads"]
    w_qkv = jnp.concatenate(
        [heads[h]["w_q"] for h in range(N_MT_HEADS)]
        + [heads[h]["w_k"] for h in range(N_MT_HEADS)]
        + [heads[h]["w_v"] for h in range(N_MT_HEADS)], axis=1)            # [H, 6H]
    b_qkv = jnp.concatenate(
        [heads[h]["b_q"] for h in range(N_MT_HEADS)]
        + [heads[h]["b_k"] for h in range(N_MT_HEADS)]
        + [heads[h]["b_v"] for h in range(N_MT_HEADS)], axis=0)[None, :]   # [1, 6H]
    # residual x folded into the same matmul: [msg | x] @ [[w_qkv], [I I I I I I]]
    eye_tile = jnp.tile(jnp.eye(HIDDEN, dtype=jnp.float32), (1, 3 * N_MT_HEADS))
    w_lin = jnp.concatenate([w_qkv, eye_tile], axis=0)                     # [2H, 6H]
    # dense per-projection MHA weights (no zero-padded block-diagonal)
    w_mha = jnp.concatenate([p["mha_w_q"], p["mha_w_k"], p["mha_w_v"]], axis=0)  # [3H, H]
    # fold MHA out-projection into W_o (no nonlinearity between them)
    w_out_bd = _block_diag(*([p["mha_w_out"]] * N_MT_HEADS))               # [2H, 2H]
    w_fold = w_out_bd @ p["wo"]                                            # [2H, H]
    b_fold = jnp.tile(p["mha_b_out"], N_MT_HEADS) @ p["wo"] + p["bo"]      # [H]
    wi = jnp.pad(p["wi"], ((0, in_dim_pad - p["wi"].shape[0]), (0, 0)))    # [F_PAD, H]
    vecs = jnp.stack([p["bi"], p["ln_i_g"], p["ln_i_b"],
                      b_fold, p["ln_o_g"], p["ln_o_b"],
                      p["mha_b_q"], p["mha_b_k"], p["mha_b_v"]], axis=0)   # [9, H]
    return dict(wi=wi, w_lin=w_lin, b_qkv=b_qkv, w_mha=w_mha,
                w_fold=w_fold, vecs=vecs)


def encoder_for_pp(params, f_atoms, f_bonds, a2b, b2a, b2revb,
                   a_scope, b_scope, a2a, features_batch=None):
    # a_scope / b_scope / features_batch are pass-through in Encoder_for_PP.
    n_atoms, n_bonds = f_atoms.shape[0], f_bonds.shape[0]
    m_atom = _agg_matrix_atom(a2a, n_atoms)
    m_bond = _agg_matrix_bond(a2b, b2a, b2revb, n_atoms, n_bonds)

    # common zero-padded slabs so node & edge blocks share one pallas_call
    feats = jnp.zeros((2, N_PAD, F_PAD), jnp.float32)
    feats = feats.at[0, :n_atoms, :f_atoms.shape[1]].set(f_atoms)
    feats = feats.at[1, :n_bonds, :f_bonds.shape[1]].set(f_bonds)
    agg = jnp.zeros((2, N_PAD, N_PAD), jnp.float32)
    agg = agg.at[0, :n_atoms, :n_atoms].set(m_atom)
    agg = agg.at[1, :n_bonds, :n_bonds].set(m_bond)

    pn = _pack_block_params(params["node_block"], F_PAD)
    pe = _pack_block_params(params["edge_block"], F_PAD)
    packed = {k: jnp.stack([pn[k], pe[k]], axis=0) for k in pn}

    out = _fused_forward(packed, feats, agg)          # [2*N_PAD, H], lane-contiguous
    node_out = out[:n_atoms]
    bond_out = out[N_PAD:N_PAD + n_bonds]
    return node_out, bond_out


# ------------------- pure-JAX reference (un-fused, gather-based) ---------------
def _ref_gather_sum(feat, idx):
    g = jnp.take(feat, idx.reshape(-1), axis=0).reshape(idx.shape + (feat.shape[-1],))
    return g.sum(axis=1)


def _ref_mt_block(p, feats, *, atom_messages, a2b=None, b2a=None, b2revb=None, a2a=None):
    x = _ln(jnp.maximum(feats @ p["wi"] + p["bi"], 0.0), p["ln_i_g"], p["ln_i_b"])
    if atom_messages:
        msg = _ref_gather_sum(x, a2a)
    else:
        msg = _ref_gather_sum(x, a2b)[b2a] - x[b2revb]
    qs, ks, vs = [], [], []
    for head in p["heads"]:
        qs.append(jnp.maximum(x + msg @ head["w_q"] + head["b_q"], 0.0))
        ks.append(jnp.maximum(x + msg @ head["w_k"] + head["b_k"], 0.0))
        vs.append(jnp.maximum(x + msg @ head["w_v"] + head["b_v"], 0.0))
    Q, K, V = (jnp.stack(t, axis=1) for t in (qs, ks, vs))                 # [N, n_mt, H]
    n, s, h = Q.shape

    def proj(z, w, b):
        y = z.reshape(n * s, h) @ w + b
        return y.reshape(n, s, MHA_HEADS, D_K).transpose(0, 2, 1, 3)       # [n, mha, s, dk]

    q = proj(Q, p["mha_w_q"], p["mha_b_q"])
    k = proj(K, p["mha_w_k"], p["mha_b_k"])
    v = proj(V, p["mha_w_v"], p["mha_b_v"])
    sc = jnp.einsum("nmqd,nmkd->nmqk", q, k) / (D_K ** 0.5)
    w_attn = jax.nn.softmax(sc, axis=-1)
    o = jnp.einsum("nmqk,nmkd->nmqd", w_attn, v)
    o = o.transpose(0, 2, 1, 3).reshape(n * s, h) @ p["mha_w_out"] + p["mha_b_out"]
    y = o.reshape(n, s * h) @ p["wo"] + p["bo"]
    return _ln(y, p["ln_o_g"], p["ln_o_b"])


def encoder_ref(params, f_atoms, f_bonds, a2b, b2a, b2revb, a2a):
    node = _ref_mt_block(params["node_block"], f_atoms, atom_messages=True, a2a=a2a)
    bond = _ref_mt_block(params["edge_block"], f_bonds, atom_messages=False,
                         a2b=a2b, b2a=b2a, b2revb=b2revb)
    return node, bond


# ------------------------------ parameter init --------------------------------
def _init_linear(key, d_in, d_out, scale=0.1):
    k1, k2 = jax.random.split(key)
    w = jax.random.normal(k1, (d_in, d_out), jnp.float32) * scale
    b = jax.random.normal(k2, (d_out,), jnp.float32) * scale
    return w, b


def init_mtblock(key, input_dim):
    keys = jax.random.split(key, 16)
    p = {}
    p["wi"], p["bi"] = _init_linear(keys[0], input_dim, HIDDEN)
    p["ln_i_g"] = jnp.ones((HIDDEN,), jnp.float32)
    p["ln_i_b"] = jnp.zeros((HIDDEN,), jnp.float32)
    heads = []
    for h in range(N_MT_HEADS):
        hk = jax.random.split(keys[1 + h], 3)
        head = {}
        for name, kk in zip(("q", "k", "v"), hk):
            w, b = _init_linear(kk, HIDDEN, HIDDEN)
            head["w_" + name] = w
            head["b_" + name] = b
        heads.append(head)
    p["heads"] = heads
    for i, name in enumerate(("q", "k", "v", "out")):
        w, b = _init_linear(keys[8 + i], HIDDEN, HIDDEN)
        p["mha_w_" + name] = w
        p["mha_b_" + name] = b
    p["wo"], p["bo"] = _init_linear(keys[12], N_MT_HEADS * HIDDEN, HIDDEN)
    p["ln_o_g"] = jnp.ones((HIDDEN,), jnp.float32)
    p["ln_o_b"] = jnp.zeros((HIDDEN,), jnp.float32)
    return p


# ------------------------------------ main -------------------------------------
if __name__ == "__main__":
    key = jax.random.PRNGKey(0)
    ks = jax.random.split(key, 8)

    f_atoms = jax.random.normal(ks[0], (N_ATOMS, ATOM_FDIM), jnp.float32).at[0].set(0.0)
    f_bonds = jax.random.normal(ks[1], (N_BONDS, BOND_FDIM), jnp.float32).at[0].set(0.0)
    a2b = jax.random.randint(ks[2], (N_ATOMS, MAX_NB), 0, N_BONDS, dtype=jnp.int32)
    b2a = jax.random.randint(ks[3], (N_BONDS,), 0, N_ATOMS, dtype=jnp.int32)
    b2revb = jnp.arange(N_BONDS, dtype=jnp.int32) ^ 1
    a2a = jax.random.randint(ks[4], (N_ATOMS, MAX_NB), 0, N_ATOMS, dtype=jnp.int32)
    a_scope = jnp.array([[1, N_ATOMS - 1]], jnp.int32)   # pass-through only
    b_scope = jnp.array([[1, N_BONDS - 1]], jnp.int32)   # pass-through only
    features_batch = jnp.zeros((1, 8), jnp.float32)      # unused by the blocks

    params = {
        "node_block": init_mtblock(ks[5], ATOM_FDIM),
        "edge_block": init_mtblock(ks[6], BOND_FDIM),
    }

    fwd = jax.jit(encoder_for_pp)
    node_out, bond_out = fwd(params, f_atoms, f_bonds, a2b, b2a, b2revb,
                             a_scope, b_scope, a2a, features_batch)
    jax.block_until_ready((node_out, bond_out))

    node_ref, bond_ref = jax.jit(encoder_ref)(params, f_atoms, f_bonds,
                                              a2b, b2a, b2revb, a2a)
    jax.block_until_ready((node_ref, bond_ref))

    assert node_out.shape == (N_ATOMS, HIDDEN)
    assert bond_out.shape == (N_BONDS, HIDDEN)
    assert bool(jnp.all(jnp.isfinite(node_out))) and bool(jnp.all(jnp.isfinite(bond_out)))
    # fused kernel (exact softmax divide, folded weights) vs un-fused gather reference:
    # only fp32 re-association differences remain -> tight tolerance.
    assert bool(jnp.allclose(node_out, node_ref, atol=2e-3, rtol=2e-3)), \
        float(jnp.max(jnp.abs(node_out - node_ref)))
    assert bool(jnp.allclose(bond_out, bond_ref, atol=2e-3, rtol=2e-3)), \
        float(jnp.max(jnp.abs(bond_out - bond_ref)))
    print("KERNEL_OK")
</pallas_src>

<mosaic_0001>
module attributes {stable_mosaic.version = 11 : i64} {
  func.func @_mtblock_kernel(%arg0: i32, %arg1: memref<1x24x64xf32, #tpu.memory_space<vmem>>, %arg2: memref<1x24x24xf32, #tpu.memory_space<vmem>>, %arg3: memref<1x64x32xf32, #tpu.memory_space<vmem>>, %arg4: memref<1x64x192xf32, #tpu.memory_space<vmem>>, %arg5: memref<1x1x192xf32, #tpu.memory_space<vmem>>, %arg6: memref<1x96x32xf32, #tpu.memory_space<vmem>>, %arg7: memref<1x64x32xf32, #tpu.memory_space<vmem>>, %arg8: memref<1x9x32xf32, #tpu.memory_space<vmem>>, %arg9: memref<24x32xf32, #tpu.memory_space<vmem>>) attributes {dimension_semantics = [#tpu.dimension_semantics<parallel>], iteration_bounds = array<i64: 2>, scalar_prefetch = 0 : i64, scratch_operands = 0 : i64, tpu.core_type = #tpu.core_type<tc>, window_params = [{transform_indices = @transform_0, window_bounds = array<i64: 1, 24, 64>}, {transform_indices = @transform_1, window_bounds = array<i64: 1, 24, 24>}, {transform_indices = @transform_2, window_bounds = array<i64: 1, 64, 32>}, {transform_indices = @transform_3, window_bounds = array<i64: 1, 64, 192>}, {transform_indices = @transform_4, window_bounds = array<i64: 1, 1, 192>}, {transform_indices = @transform_5, window_bounds = array<i64: 1, 96, 32>}, {transform_indices = @transform_6, window_bounds = array<i64: 1, 64, 32>}, {transform_indices = @transform_7, window_bounds = array<i64: 1, 9, 32>}, {transform_indices = @transform_8, window_bounds = array<i64: 24, 32>}]} {
    %c0 = arith.constant 0 : index
    %c0_0 = arith.constant 0 : index
    %c0_1 = arith.constant 0 : index
    %0 = vector.load %arg8[%c0, %c0_0, %c0_1] : memref<1x9x32xf32, #tpu.memory_space<vmem>>, vector<1x9x32xf32>
    %1 = vector.shape_cast %0 : vector<1x9x32xf32> to vector<9x32xf32>
    %2 = vector.extract_strided_slice %1 {offsets = [0, 0], sizes = [1, 32], strides = [1, 1]} : vector<9x32xf32> to vector<1x32xf32>
    %3 = vector.extract_strided_slice %1 {offsets = [1, 0], sizes = [1, 32], strides = [1, 1]} : vector<9x32xf32> to vector<1x32xf32>
    %4 = vector.extract_strided_slice %1 {offsets = [2, 0], sizes = [1, 32], strides = [1, 1]} : vector<9x32xf32> to vector<1x32xf32>
    %5 = vector.extract_strided_slice %1 {offsets = [3, 0], sizes = [1, 32], strides = [1, 1]} : vector<9x32xf32> to vector<1x32xf32>
    %6 = vector.extract_strided_slice %1 {offsets = [4, 0], sizes = [1, 32], strides = [1, 1]} : vector<9x32xf32> to vector<1x32xf32>
    %7 = vector.extract_strided_slice %1 {offsets = [5, 0], sizes = [1, 32], strides = [1, 1]} : vector<9x32xf32> to vector<1x32xf32>
    %8 = vector.extract_strided_slice %1 {offsets = [6, 0], sizes = [1, 32], strides = [1, 1]} : vector<9x32xf32> to vector<1x32xf32>
    %9 = vector.extract_strided_slice %1 {offsets = [7, 0], sizes = [1, 32], strides = [1, 1]} : vector<9x32xf32> to vector<1x32xf32>
    %10 = vector.extract_strided_slice %1 {offsets = [8, 0], sizes = [1, 32], strides = [1, 1]} : vector<9x32xf32> to vector<1x32xf32>
    %c0_2 = arith.constant 0 : index
    %c0_3 = arith.constant 0 : index
    %c0_4 = arith.constant 0 : index
    %11 = vector.load %arg1[%c0_2, %c0_3, %c0_4] : memref<1x24x64xf32, #tpu.memory_space<vmem>>, vector<1x24x64xf32>
    %12 = vector.shape_cast %11 : vector<1x24x64xf32> to vector<24x64xf32>
    %c0_5 = arith.constant 0 : index
    %c0_6 = arith.constant 0 : index
    %c0_7 = arith.constant 0 : index
    %13 = vector.load %arg3[%c0_5, %c0_6, %c0_7] : memref<1x64x32xf32, #tpu.memory_space<vmem>>, vector<1x64x32xf32>
    %14 = vector.shape_cast %13 : vector<1x64x32xf32> to vector<64x32xf32>
    %cst = arith.constant dense<0.000000e+00> : vector<24x32xf32>
    %15 = tpu.matmul %12, %14, %cst {dimension_numbers = #tpu.dot_dimension_numbers<[1], [0], [0], [1], [0, 0, 1, 1], [], []>} : vector<24x64xf32>, vector<64x32xf32>, vector<24x32xf32> -> vector<24x32xf32>
    %16 = vector.broadcast %2 : vector<1x32xf32> to vector<24x32xf32>
    %17 = arith.addf %15, %16 : vector<24x32xf32>
    %cst_8 = arith.constant 0.000000e+00 : f32
    %18 = vector.broadcast %cst_8 : f32 to vector<24x32xf32>
    %19 = arith.maximumf %17, %18 : vector<24x32xf32>
    %cst_9 = arith.constant dense<0.000000e+00> : vector<24xf32>
    %20 = vector.multi_reduction <add>, %19, %cst_9 [1] : vector<24x32xf32> to vector<24xf32>
    %21 = vector.shape_cast %20 : vector<24xf32> to vector<24x1xf32>
    %cst_10 = arith.constant 3.200000e+01 : f32
    %22 = vector.broadcast %cst_10 : f32 to vector<24x1xf32>
    %23 = arith.divf %21, %22 : vector<24x1xf32>
    %24 = vector.broadcast %23 : vector<24x1xf32> to vector<24x32xf32>
    %25 = arith.subf %19, %24 : vector<24x32xf32>
    %26 = arith.mulf %25, %25 : vector<24x32xf32>
    %cst_11 = arith.constant dense<0.000000e+00> : vector<24xf32>
    %27 = vector.multi_reduction <add>, %26, %cst_11 [1] : vector<24x32xf32> to vector<24xf32>
    %28 = vector.shape_cast %27 : vector<24xf32> to vector<24x1xf32>
    %cst_12 = arith.constant 3.200000e+01 : f32
    %29 = vector.broadcast %cst_12 : f32 to vector<24x1xf32>
    %30 = arith.divf %28, %29 : vector<24x1xf32>
    %31 = vector.broadcast %23 : vector<24x1xf32> to vector<24x32xf32>
    %32 = arith.subf %19, %31 : vector<24x32xf32>
    %cst_13 = arith.constant 9.99999974E-6 : f32
    %33 = vector.broadcast %cst_13 : f32 to vector<24x1xf32>
    %34 = arith.addf %30, %33 : vector<24x1xf32>
    %35 = math.rsqrt %34 : vector<24x1xf32>
    %36 = vector.broadcast %35 : vector<24x1xf32> to vector<24x32xf32>
    %37 = arith.mulf %32, %36 : vector<24x32xf32>
    %38 = vector.broadcast %3 : vector<1x32xf32> to vector<24x32xf32>
    %39 = arith.mulf %37, %38 : vector<24x32xf32>
    %40 = vector.broadcast %4 : vector<1x32xf32> to vector<24x32xf32>
    %41 = arith.addf %39, %40 : vector<24x32xf32>
    %c0_14 = arith.constant 0 : index
    %c0_15 = arith.constant 0 : index
    %c0_16 = arith.constant 0 : index
    %42 = vector.load %arg2[%c0_14, %c0_15, %c0_16] : memref<1x24x24xf32, #tpu.memory_space<vmem>>, vector<1x24x24xf32>
    %43 = vector.shape_cast %42 : vector<1x24x24xf32> to vector<24x24xf32>
    %cst_17 = arith.constant dense<0.000000e+00> : vector<24x32xf32>
    %44 = tpu.matmul %43, %41, %cst_17 {dimension_numbers = #tpu.dot_dimension_numbers<[1], [0], [0], [1], [0, 0, 1, 1], [], []>} : vector<24x24xf32>, vector<24x32xf32>, vector<24x32xf32> -> vector<24x32xf32>
    %45 = tpu.concatenate %44, %41 in 1 : vector<24x32xf32>, vector<24x32xf32> -> vector<24x64xf32>
    %c0_18 = arith.constant 0 : index
    %c0_19 = arith.constant 0 : index
    %c0_20 = arith.constant 0 : index
    %46 = vector.load %arg4[%c0_18, %c0_19, %c0_20] : memref<1x64x192xf32, #tpu.memory_space<vmem>>, vector<1x64x192xf32>
    %47 = vector.shape_cast %46 : vector<1x64x192xf32> to vector<64x192xf32>
    %cst_21 = arith.constant dense<0.000000e+00> : vector<24x192xf32>
    %48 = tpu.matmul %45, %47, %cst_21 {dimension_numbers = #tpu.dot_dimension_numbers<[1], [0], [0], [1], [0, 0, 1, 1], [], []>} : vector<24x64xf32>, vector<64x192xf32>, vector<24x192xf32> -> vector<24x192xf32>
    %c0_22 = arith.constant 0 : index
    %c0_23 = arith.constant 0 : index
    %c0_24 = arith.constant 0 : index
    %49 = vector.load %arg5[%c0_22, %c0_23, %c0_24] : memref<1x1x192xf32, #tpu.memory_space<vmem>>, vector<1x1x192xf32>
    %50 = vector.shape_cast %49 : vector<1x1x192xf32> to vector<1x192xf32>
    %51 = vector.broadcast %50 : vector<1x192xf32> to vector<24x192xf32>
    %52 = arith.addf %48, %51 : vector<24x192xf32>
    %cst_25 = arith.constant 0.000000e+00 : f32
    %53 = vector.broadcast %cst_25 : f32 to vector<24x192xf32>
    %54 = arith.maximumf %52, %53 : vector<24x192xf32>
    %c0_26 = arith.constant 0 : index
    %c0_27 = arith.constant 0 : index
    %c0_28 = arith.constant 0 : index
    %55 = vector.load %arg6[%c0_26, %c0_27, %c0_28] : memref<1x96x32xf32, #tpu.memory_space<vmem>>, vector<1x96x32xf32>
    %56 = vector.shape_cast %55 : vector<1x96x32xf32> to vector<96x32xf32>
    %57 = vector.extract_strided_slice %56 {offsets = [0, 0], sizes = [32, 32], strides = [1, 1]} : vector<96x32xf32> to vector<32x32xf32>
    %58 = vector.extract_strided_slice %56 {offsets = [32, 0], sizes = [32, 32], strides = [1, 1]} : vector<96x32xf32> to vector<32x32xf32>
    %59 = vector.extract_strided_slice %56 {offsets = [64, 0], sizes = [32, 32], strides = [1, 1]} : vector<96x32xf32> to vector<32x32xf32>
    %60 = vector.extract_strided_slice %54 {offsets = [0, 0], sizes = [24, 32], strides = [1, 1]} : vector<24x192xf32> to vector<24x32xf32>
    %cst_29 = arith.constant dense<0.000000e+00> : vector<24x32xf32>
    %61 = tpu.matmul %60, %57, %cst_29 {dimension_numbers = #tpu.dot_dimension_numbers<[1], [0], [0], [1], [0, 0, 1, 1], [], []>} : vector<24x32xf32>, vector<32x32xf32>, vector<24x32xf32> -> vector<24x32xf32>
    %62 = vector.broadcast %8 : vector<1x32xf32> to vector<24x32xf32>
    %63 = arith.addf %61, %62 : vector<24x32xf32>
    %64 = vector.extract_strided_slice %54 {offsets = [0, 32], sizes = [24, 32], strides = [1, 1]} : vector<24x192xf32> to vector<24x32xf32>
    %cst_30 = arith.constant dense<0.000000e+00> : vector<24x32xf32>
    %65 = tpu.matmul %64, %57, %cst_30 {dimension_numbers = #tpu.dot_dimension_numbers<[1], [0], [0], [1], [0, 0, 1, 1], [], []>} : vector<24x32xf32>, vector<32x32xf32>, vector<24x32xf32> -> vector<24x32xf32>
    %66 = vector.broadcast %8 : vector<1x32xf32> to vector<24x32xf32>
    %67 = arith.addf %65, %66 : vector<24x32xf32>
    %68 = vector.extract_strided_slice %54 {offsets = [0, 64], sizes = [24, 32], strides = [1, 1]} : vector<24x192xf32> to vector<24x32xf32>
    %cst_31 = arith.constant dense<0.000000e+00> : vector<24x32xf32>
    %69 = tpu.matmul %68, %58, %cst_31 {dimension_numbers = #tpu.dot_dimension_numbers<[1], [0], [0], [1], [0, 0, 1, 1], [], []>} : vector<24x32xf32>, vector<32x32xf32>, vector<24x32xf32> -> vector<24x32xf32>
    %70 = vector.broadcast %9 : vector<1x32xf32> to vector<24x32xf32>
    %71 = arith.addf %69, %70 : vector<24x32xf32>
    %72 = vector.extract_strided_slice %54 {offsets = [0, 96], sizes = [24, 32], strides = [1, 1]} : vector<24x192xf32> to vector<24x32xf32>
    %cst_32 = arith.constant dense<0.000000e+00> : vector<24x32xf32>
    %73 = tpu.matmul %72, %58, %cst_32 {dimension_numbers = #tpu.dot_dimension_numbers<[1], [0], [0], [1], [0, 0, 1, 1], [], []>} : vector<24x32xf32>, vector<32x32xf32>, vector<24x32xf32> -> vector<24x32xf32>
    %74 = vector.broadcast %9 : vector<1x32xf32> to vector<24x32xf32>
    %75 = arith.addf %73, %74 : vector<24x32xf32>
    %76 = vector.extract_strided_slice %54 {offsets = [0, 128], sizes = [24, 32], strides = [1, 1]} : vector<24x192xf32> to vector<24x32xf32>
    %cst_33 = arith.constant dense<0.000000e+00> : vector<24x32xf32>
    %77 = tpu.matmul %76, %59, %cst_33 {dimension_numbers = #tpu.dot_dimension_numbers<[1], [0], [0], [1], [0, 0, 1, 1], [], []>} : vector<24x32xf32>, vector<32x32xf32>, vector<24x32xf32> -> vector<24x32xf32>
    %78 = vector.broadcast %10 : vector<1x32xf32> to vector<24x32xf32>
    %79 = arith.addf %77, %78 : vector<24x32xf32>
    %80 = vector.extract_strided_slice %54 {offsets = [0, 160], sizes = [24, 32], strides = [1, 1]} : vector<24x192xf32> to vector<24x32xf32>
    %cst_34 = arith.constant dense<0.000000e+00> : vector<24x32xf32>
    %81 = tpu.matmul %80, %59, %cst_34 {dimension_numbers = #tpu.dot_dimension_numbers<[1], [0], [0], [1], [0, 0, 1, 1], [], []>} : vector<24x32xf32>, vector<32x32xf32>, vector<24x32xf32> -> vector<24x32xf32>
    %82 = vector.broadcast %10 : vector<1x32xf32> to vector<24x32xf32>
    %83 = arith.addf %81, %82 : vector<24x32xf32>
    %c0_35 = arith.constant 0 : index
    %c0_36 = arith.constant 0 : index
    %c0_37 = arith.constant 0 : index
    %84 = vector.load %arg7[%c0_35, %c0_36, %c0_37] : memref<1x64x32xf32, #tpu.memory_space<vmem>>, vector<1x64x32xf32>
    %85 = vector.shape_cast %84 : vector<1x64x32xf32> to vector<64x32xf32>
    %cst_38 = arith.constant 0.000000e+00 : f32
    %86 = vector.broadcast %cst_38 : f32 to vector<24x32xf32>
    %87 = vector.extract_strided_slice %71 {offsets = [0, 0], sizes = [24, 16], strides = [1, 1]} : vector<24x32xf32> to vector<24x16xf32>
    %88 = vector.extract_strided_slice %75 {offsets = [0, 0], sizes = [24, 16], strides = [1, 1]} : vector<24x32xf32> to vector<24x16xf32>
    %89 = vector.extract_strided_slice %79 {offsets = [0, 0], sizes = [24, 16], strides = [1, 1]} : vector<24x32xf32> to vector<24x16xf32>
    %90 = vector.extract_strided_slice %83 {offsets = [0, 0], sizes = [24, 16], strides = [1, 1]} : vector<24x32xf32> to vector<24x16xf32>
    %91 = vector.extract_strided_slice %63 {offsets = [0, 0], sizes = [24, 16], strides = [1, 1]} : vector<24x32xf32> to vector<24x16xf32>
    %92 = arith.mulf %91, %87 : vector<24x16xf32>
    %cst_39 = arith.constant dense<0.000000e+00> : vector<24xf32>
    %93 = vector.multi_reduction <add>, %92, %cst_39 [1] : vector<24x16xf32> to vector<24xf32>
    %94 = vector.shape_cast %93 : vector<24xf32> to vector<24x1xf32>
    %cst_40 = arith.constant 2.500000e-01 : f32
    %95 = vector.broadcast %cst_40 : f32 to vector<24x1xf32>
    %96 = arith.mulf %94, %95 : vector<24x1xf32>
    %97 = arith.mulf %91, %88 : vector<24x16xf32>
    %cst_41 = arith.constant dense<0.000000e+00> : vector<24xf32>
    %98 = vector.multi_reduction <add>, %97, %cst_41 [1] : vector<24x16xf32> to vector<24xf32>
    %99 = vector.shape_cast %98 : vector<24xf32> to vector<24x1xf32>
    %cst_42 = arith.constant 2.500000e-01 : f32
    %100 = vector.broadcast %cst_42 : f32 to vector<24x1xf32>
    %101 = arith.mulf %99, %100 : vector<24x1xf32>
    %102 = arith.maximumf %96, %101 : vector<24x1xf32>
    %103 = arith.subf %96, %102 : vector<24x1xf32>
    %104 = math.exp %103 : vector<24x1xf32>
    %105 = arith.subf %101, %102 : vector<24x1xf32>
    %106 = math.exp %105 : vector<24x1xf32>
    %107 = arith.addf %104, %106 : vector<24x1xf32>
    %cst_43 = arith.constant 1.000000e+00 : f32
    %108 = vector.broadcast %cst_43 : f32 to vector<24x1xf32>
    %109 = arith.divf %108, %107 : vector<24x1xf32>
    %110 = arith.mulf %104, %109 : vector<24x1xf32>
    %111 = vector.broadcast %110 : vector<24x1xf32> to vector<24x16xf32>
    %112 = arith.mulf %111, %89 : vector<24x16xf32>
    %113 = arith.mulf %106, %109 : vector<24x1xf32>
    %114 = vector.broadcast %113 : vector<24x1xf32> to vector<24x16xf32>
    %115 = arith.mulf %114, %90 : vector<24x16xf32>
    %116 = arith.addf %112, %115 : vector<24x16xf32>
    %117 = vector.extract_strided_slice %85 {offsets = [0, 0], sizes = [16, 32], strides = [1, 1]} : vector<64x32xf32> to vector<16x32xf32>
    %cst_44 = arith.constant dense<0.000000e+00> : vector<24x32xf32>
    %118 = tpu.matmul %116, %117, %cst_44 {dimension_numbers = #tpu.dot_dimension_numbers<[1], [0], [0], [1], [0, 0, 1, 1], [], []>} : vector<24x16xf32>, vector<16x32xf32>, vector<24x32xf32> -> vector<24x32xf32>
    %119 = arith.addf %86, %118 : vector<24x32xf32>
    %120 = vector.extract_strided_slice %67 {offsets = [0, 0], sizes = [24, 16], strides = [1, 1]} : vector<24x32xf32> to vector<24x16xf32>
    %121 = arith.mulf %120, %87 : vector<24x16xf32>
    %cst_45 = arith.constant dense<0.000000e+00> : vector<24xf32>
    %122 = vector.multi_reduction <add>, %121, %cst_45 [1] : vector<24x16xf32> to vector<24xf32>
    %123 = vector.shape_cast %122 : vector<24xf32> to vector<24x1xf32>
    %cst_46 = arith.constant 2.500000e-01 : f32
    %124 = vector.broadcast %cst_46 : f32 to vector<24x1xf32>
    %125 = arith.mulf %123, %124 : vector<24x1xf32>
    %126 = arith.mulf %120, %88 : vector<24x16xf32>
    %cst_47 = arith.constant dense<0.000000e+00> : vector<24xf32>
    %127 = vector.multi_reduction <add>, %126, %cst_47 [1] : vector<24x16xf32> to vector<24xf32>
    %128 = vector.shape_cast %127 : vector<24xf32> to vector<24x1xf32>
    %cst_48 = arith.constant 2.500000e-01 : f32
    %129 = vector.broadcast %cst_48 : f32 to vector<24x1xf32>
    %130 = arith.mulf %128, %129 : vector<24x1xf32>
    %131 = arith.maximumf %125, %130 : vector<24x1xf32>
    %132 = arith.subf %125, %131 : vector<24x1xf32>
    %133 = math.exp %132 : vector<24x1xf32>
    %134 = arith.subf %130, %131 : vector<24x1xf32>
    %135 = math.exp %134 : vector<24x1xf32>
    %136 = arith.addf %133, %135 : vector<24x1xf32>
    %cst_49 = arith.constant 1.000000e+00 : f32
    %137 = vector.broadcast %cst_49 : f32 to vector<24x1xf32>
    %138 = arith.divf %137, %136 : vector<24x1xf32>
    %139 = arith.mulf %133, %138 : vector<24x1xf32>
    %140 = vector.broadcast %139 : vector<24x1xf32> to vector<24x16xf32>
    %141 = arith.mulf %140, %89 : vector<24x16xf32>
    %142 = arith.mulf %135, %138 : vector<24x1xf32>
    %143 = vector.broadcast %142 : vector<24x1xf32> to vector<24x16xf32>
    %144 = arith.mulf %143, %90 : vector<24x16xf32>
    %145 = arith.addf %141, %144 : vector<24x16xf32>
    %146 = vector.extract_strided_slice %85 {offsets = [32, 0], sizes = [16, 32], strides = [1, 1]} : vector<64x32xf32> to vector<16x32xf32>
    %cst_50 = arith.constant dense<0.000000e+00> : vector<24x32xf32>
    %147 = tpu.matmul %145, %146, %cst_50 {dimension_numbers = #tpu.dot_dimension_numbers<[1], [0], [0], [1], [0, 0, 1, 1], [], []>} : vector<24x16xf32>, vector<16x32xf32>, vector<24x32xf32> -> vector<24x32xf32>
    %148 = arith.addf %119, %147 : vector<24x32xf32>
    %149 = vector.extract_strided_slice %71 {offsets = [0, 16], sizes = [24, 16], strides = [1, 1]} : vector<24x32xf32> to vector<24x16xf32>
    %150 = vector.extract_strided_slice %75 {offsets = [0, 16], sizes = [24, 16], strides = [1, 1]} : vector<24x32xf32> to vector<24x16xf32>
    %151 = vector.extract_strided_slice %79 {offsets = [0, 16], sizes = [24, 16], strides = [1, 1]} : vector<24x32xf32> to vector<24x16xf32>
    %152 = vector.extract_strided_slice %83 {offsets = [0, 16], sizes = [24, 16], strides = [1, 1]} : vector<24x32xf32> to vector<24x16xf32>
    %153 = vector.extract_strided_slice %63 {offsets = [0, 16], sizes = [24, 16], strides = [1, 1]} : vector<24x32xf32> to vector<24x16xf32>
    %154 = arith.mulf %153, %149 : vector<24x16xf32>
    %cst_51 = arith.constant dense<0.000000e+00> : vector<24xf32>
    %155 = vector.multi_reduction <add>, %154, %cst_51 [1] : vector<24x16xf32> to vector<24xf32>
    %156 = vector.shape_cast %155 : vector<24xf32> to vector<24x1xf32>
    %cst_52 = arith.constant 2.500000e-01 : f32
    %157 = vector.broadcast %cst_52 : f32 to vector<24x1xf32>
    %158 = arith.mulf %156, %157 : vector<24x1xf32>
    %159 = arith.mulf %153, %150 : vector<24x16xf32>
    %cst_53 = arith.constant dense<0.000000e+00> : vector<24xf32>
    %160 = vector.multi_reduction <add>, %159, %cst_53 [1] : vector<24x16xf32> to vector<24xf32>
    %161 = vector.shape_cast %160 : vector<24xf32> to vector<24x1xf32>
    %cst_54 = arith.constant 2.500000e-01 : f32
    %162 = vector.broadcast %cst_54 : f32 to vector<24x1xf32>
    %163 = arith.mulf %161, %162 : vector<24x1xf32>
    %164 = arith.maximumf %158, %163 : vector<24x1xf32>
    %165 = arith.subf %158, %164 : vector<24x1xf32>
    %166 = math.exp %165 : vector<24x1xf32>
    %167 = arith.subf %163, %164 : vector<24x1xf32>
    %168 = math.exp %167 : vector<24x1xf32>
    %169 = arith.addf %166, %168 : vector<24x1xf32>
    %cst_55 = arith.constant 1.000000e+00 : f32
    %170 = vector.broadcast %cst_55 : f32 to vector<24x1xf32>
    %171 = arith.divf %170, %169 : vector<24x1xf32>
    %172 = arith.mulf %166, %171 : vector<24x1xf32>
    %173 = vector.broadcast %172 : vector<24x1xf32> to vector<24x16xf32>
    %174 = arith.mulf %173, %151 : vector<24x16xf32>
    %175 = arith.mulf %168, %171 : vector<24x1xf32>
    %176 = vector.broadcast %175 : vector<24x1xf32> to vector<24x16xf32>
    %177 = arith.mulf %176, %152 : vector<24x16xf32>
    %178 = arith.addf %174, %177 : vector<24x16xf32>
    %179 = vector.extract_strided_slice %85 {offsets = [16, 0], sizes = [16, 32], strides = [1, 1]} : vector<64x32xf32> to vector<16x32xf32>
    %cst_56 = arith.constant dense<0.000000e+00> : vector<24x32xf32>
    %180 = tpu.matmul %178, %179, %cst_56 {dimension_numbers = #tpu.dot_dimension_numbers<[1], [0], [0], [1], [0, 0, 1, 1], [], []>} : vector<24x16xf32>, vector<16x32xf32>, vector<24x32xf32> -> vector<24x32xf32>
    %181 = arith.addf %148, %180 : vector<24x32xf32>
    %182 = vector.extract_strided_slice %67 {offsets = [0, 16], sizes = [24, 16], strides = [1, 1]} : vector<24x32xf32> to vector<24x16xf32>
    %183 = arith.mulf %182, %149 : vector<24x16xf32>
    %cst_57 = arith.constant dense<0.000000e+00> : vector<24xf32>
    %184 = vector.multi_reduction <add>, %183, %cst_57 [1] : vector<24x16xf32> to vector<24xf32>
    %185 = vector.shape_cast %184 : vector<24xf32> to vector<24x1xf32>
    %cst_58 = arith.constant 2.500000e-01 : f32
    %186 = vector.broadcast %cst_58 : f32 to vector<24x1xf32>
    %187 = arith.mulf %185, %186 : vector<24x1xf32>
    %188 = arith.mulf %182, %150 : vector<24x16xf32>
    %cst_59 = arith.constant dense<0.000000e+00> : vector<24xf32>
    %189 = vector.multi_reduction <add>, %188, %cst_59 [1] : vector<24x16xf32> to vector<24xf32>
    %190 = vector.shape_cast %189 : vector<24xf32> to vector<24x1xf32>
    %cst_60 = arith.constant 2.500000e-01 : f32
    %191 = vector.broadcast %cst_60 : f32 to vector<24x1xf32>
    %192 = arith.mulf %190, %191 : vector<24x1xf32>
    %193 = arith.maximumf %187, %192 : vector<24x1xf32>
    %194 = arith.subf %187, %193 : vector<24x1xf32>
    %195 = math.exp %194 : vector<24x1xf32>
    %196 = arith.subf %192, %193 : vector<24x1xf32>
    %197 = math.exp %196 : vector<24x1xf32>
    %198 = arith.addf %195, %197 : vector<24x1xf32>
    %cst_61 = arith.constant 1.000000e+00 : f32
    %199 = vector.broadcast %cst_61 : f32 to vector<24x1xf32>
    %200 = arith.divf %199, %198 : vector<24x1xf32>
    %201 = arith.mulf %195, %200 : vector<24x1xf32>
    %202 = vector.broadcast %201 : vector<24x1xf32> to vector<24x16xf32>
    %203 = arith.mulf %202, %151 : vector<24x16xf32>
    %204 = arith.mulf %197, %200 : vector<24x1xf32>
    %205 = vector.broadcast %204 : vector<24x1xf32> to vector<24x16xf32>
    %206 = arith.mulf %205, %152 : vector<24x16xf32>
    %207 = arith.addf %203, %206 : vector<24x16xf32>
    %208 = vector.extract_strided_slice %85 {offsets = [48, 0], sizes = [16, 32], strides = [1, 1]} : vector<64x32xf32> to vector<16x32xf32>
    %cst_62 = arith.constant dense<0.000000e+00> : vector<24x32xf32>
    %209 = tpu.matmul %207, %208, %cst_62 {dimension_numbers = #tpu.dot_dimension_numbers<[1], [0], [0], [1], [0, 0, 1, 1], [], []>} : vector<24x16xf32>, vector<16x32xf32>, vector<24x32xf32> -> vector<24x32xf32>
    %210 = arith.addf %181, %209 : vector<24x32xf32>
    %211 = vector.broadcast %5 : vector<1x32xf32> to vector<24x32xf32>
    %212 = arith.addf %210, %211 : vector<24x32xf32>
    %cst_63 = arith.constant dense<0.000000e+00> : vector<24xf32>
    %213 = vector.multi_reduction <add>, %212, %cst_63 [1] : vector<24x32xf32> to vector<24xf32>
    %214 = vector.shape_cast %213 : vector<24xf32> to vector<24x1xf32>
    %cst_64 = arith.constant 3.200000e+01 : f32
    %215 = vector.broadcast %cst_64 : f32 to vector<24x1xf32>
    %216 = arith.divf %214, %215 : vector<24x1xf32>
    %217 = vector.broadcast %216 : vector<24x1xf32> to vector<24x32xf32>
    %218 = arith.subf %212, %217 : vector<24x32xf32>
    %219 = arith.mulf %218, %218 : vector<24x32xf32>
    %cst_65 = arith.constant dense<0.000000e+00> : vector<24xf32>
    %220 = vector.multi_reduction <add>, %219, %cst_65 [1] : vector<24x32xf32> to vector<24xf32>
    %221 = vector.shape_cast %220 : vector<24xf32> to vector<24x1xf32>
    %cst_66 = arith.constant 3.200000e+01 : f32
    %222 = vector.broadcast %cst_66 : f32 to vector<24x1xf32>
    %223 = arith.divf %221, %222 : vector<24x1xf32>
    %224 = vector.broadcast %216 : vector<24x1xf32> to vector<24x32xf32>
    %225 = arith.subf %212, %224 : vector<24x32xf32>
    %cst_67 = arith.constant 9.99999974E-6 : f32
    %226 = vector.broadcast %cst_67 : f32 to vector<24x1xf32>
    %227 = arith.addf %223, %226 : vector<24x1xf32>
    %228 = math.rsqrt %227 : vector<24x1xf32>
    %229 = vector.broadcast %228 : vector<24x1xf32> to vector<24x32xf32>
    %230 = arith.mulf %225, %229 : vector<24x32xf32>
    %231 = vector.broadcast %6 : vector<1x32xf32> to vector<24x32xf32>
    %232 = arith.mulf %230, %231 : vector<24x32xf32>
    %233 = vector.broadcast %7 : vector<1x32xf32> to vector<24x32xf32>
    %234 = arith.addf %232, %233 : vector<24x32xf32>
    %c0_68 = arith.constant 0 : index
    %c0_69 = arith.constant 0 : index
    %235 = vector.load %arg9[%c0_68, %c0_69] : memref<24x32xf32, #tpu.memory_space<vmem>>, vector<24x32xf32>
    tpu.vector_store %arg9[%c0_68, %c0_69], %234 {strides = array<i32>} : memref<24x32xf32, #tpu.memory_space<vmem>>, vector<24x32xf32>,
    return
  }
  func.func @transform_0(%arg0: i32) -> (i32, i32, i32) {
    %c0_i32 = arith.constant 0 : i32
    %c0_i32_0 = arith.constant 0 : i32
    %c0_i32_1 = arith.constant 0 : i32
    return %arg0, %c0_i32, %c0_i32_0 : i32, i32, i32
  }
  func.func @transform_1(%arg0: i32) -> (i32, i32, i32) {
    %c0_i32 = arith.constant 0 : i32
    %c0_i32_0 = arith.constant 0 : i32
    %c0_i32_1 = arith.constant 0 : i32
    return %arg0, %c0_i32, %c0_i32_0 : i32, i32, i32
  }
  func.func @transform_2(%arg0: i32) -> (i32, i32, i32) {
    %c0_i32 = arith.constant 0 : i32
    %c0_i32_0 = arith.constant 0 : i32
    %c0_i32_1 = arith.constant 0 : i32
    return %arg0, %c0_i32, %c0_i32_0 : i32, i32, i32
  }
  func.func @transform_3(%arg0: i32) -> (i32, i32, i32) {
    %c0_i32 = arith.constant 0 : i32
    %c0_i32_0 = arith.constant 0 : i32
    %c0_i32_1 = arith.constant 0 : i32
    return %arg0, %c0_i32, %c0_i32_0 : i32, i32, i32
  }
  func.func @transform_4(%arg0: i32) -> (i32, i32, i32) {
    %c0_i32 = arith.constant 0 : i32
    %c0_i32_0 = arith.constant 0 : i32
    %c0_i32_1 = arith.constant 0 : i32
    return %arg0, %c0_i32, %c0_i32_0 : i32, i32, i32
  }
  func.func @transform_5(%arg0: i32) -> (i32, i32, i32) {
    %c0_i32 = arith.constant 0 : i32
    %c0_i32_0 = arith.constant 0 : i32
    %c0_i32_1 = arith.constant 0 : i32
    return %arg0, %c0_i32, %c0_i32_0 : i32, i32, i32
  }
  func.func @transform_6(%arg0: i32) -> (i32, i32, i32) {
    %c0_i32 = arith.constant 0 : i32
    %c0_i32_0 = arith.constant 0 : i32
    %c0_i32_1 = arith.constant 0 : i32
    return %arg0, %c0_i32, %c0_i32_0 : i32, i32, i32
  }
  func.func @transform_7(%arg0: i32) -> (i32, i32, i32) {
    %c0_i32 = arith.constant 0 : i32
    %c0_i32_0 = arith.constant 0 : i32
    %c0_i32_1 = arith.constant 0 : i32
    return %arg0, %c0_i32, %c0_i32_0 : i32, i32, i32
  }
  func.func @transform_8(%arg0: i32) -> (i32, i32) {
    %c0_i32 = arith.constant 0 : i32
    %c0_i32_0 = arith.constant 0 : i32
    return %arg0, %c0_i32 : i32, i32
  }
}

</mosaic_0001>

<llo_original>
// kernel: tile.24
$region0: #{tile.24}
  %s0 = inlined_call_operand.vmem [shape: f32[32,6,32], index: 0, kind: input, shape index: {}]
  %s1 = inlined_call_operand.vmem [shape: f32[32,192], index: 1, kind: output, shape index: {}]
  %v2 = vld [vmem:[%s0] ss:$4 sm:$0xff]
  %vm3 = vcmask 261120
  %4 = vst.msk [vmem:[%s1] ss:$8 sm:$0x3] %vm3, %v2
  %s5 = scalar_lea.vmem %s1, 4294967281
  %6 = vst.msk [vmem:[%s5] ss:$8 sm:$0xc] %vm3, %v2
  %s7 = scalar_lea.vmem %s1, 4294967266
  %8 = vst.msk [vmem:[%s7] ss:$8 sm:$0x30] %vm3, %v2
  %s9 = scalar_lea.vmem %s1, 4294967251
  %10 = vst.msk [vmem:[%s9] ss:$8 sm:$0xc0] %vm3, %v2
  %s11 = scalar_lea.vmem %s0, 32
  %v12 = vld [vmem:[%s11] ss:$4 sm:$0xff]
  %vm13 = vcmask 261120
  %s14 = scalar_lea.vmem %s1, 4
  %15 = vst.msk [vmem:[%s14] ss:$8 sm:$0x3] %vm13, %v12
  %s16 = scalar_lea.vmem %s1, 4294967285
  %17 = vst.msk [vmem:[%s16] ss:$8 sm:$0xc] %vm13, %v12
  %s18 = scalar_lea.vmem %s1, 4294967270
  %19 = vst.msk [vmem:[%s18] ss:$8 sm:$0x30] %vm13, %v12
  %s20 = scalar_lea.vmem %s1, 4294967255
  %21 = vst.msk [vmem:[%s20] ss:$8 sm:$0xc0] %vm13, %v12
  %s22 = scalar_lea.vmem %s0, 64
  %v23 = vld [vmem:[%s22] ss:$4 sm:$0xff]
  %vm24 = vcmask 261120
  %s25 = scalar_lea.vmem %s1, 16
  %26 = vst.msk [vmem:[%s25] ss:$8 sm:$0x3] %vm24, %v23
  %s27 = scalar_lea.vmem %s1, 1
  %28 = vst.msk [vmem:[%s27] ss:$8 sm:$0xc] %vm24, %v23
  %s29 = scalar_lea.vmem %s1, 4294967282
  %30 = vst.msk [vmem:[%s29] ss:$8 sm:$0x30] %vm24, %v23
  %s31 = scalar_lea.vmem %s1, 4294967267
  %32 = vst.msk [vmem:[%s31] ss:$8 sm:$0xc0] %vm24, %v23
  %s33 = scalar_lea.vmem %s0, 96
  %v34 = vld [vmem:[%s33] ss:$4 sm:$0xff]
  %vm35 = vcmask 261120
  %s36 = scalar_lea.vmem %s1, 20
  %37 = vst.msk [vmem:[%s36] ss:$8 sm:$0x3] %vm35, %v34
  %s38 = scalar_lea.vmem %s1, 5
  %39 = vst.msk [vmem:[%s38] ss:$8 sm:$0xc] %vm35, %v34
  %s40 = scalar_lea.vmem %s1, 4294967286
  %41 = vst.msk [vmem:[%s40] ss:$8 sm:$0x30] %vm35, %v34
  %s42 = scalar_lea.vmem %s1, 4294967271
  %43 = vst.msk [vmem:[%s42] ss:$8 sm:$0xc0] %vm35, %v34
  %s44 = scalar_lea.vmem %s0, 128
  %v45 = vld [vmem:[%s44] ss:$4 sm:$0xff]
  %vm46 = vcmask 261120
  %s47 = scalar_lea.vmem %s1, 32
  %48 = vst.msk [vmem:[%s47] ss:$8 sm:$0x3] %vm46, %v45
  %s49 = scalar_lea.vmem %s1, 17
  %50 = vst.msk [vmem:[%s49] ss:$8 sm:$0xc] %vm46, %v45
  %s51 = scalar_lea.vmem %s1, 2
  %52 = vst.msk [vmem:[%s51] ss:$8 sm:$0x30] %vm46, %v45
  %s53 = scalar_lea.vmem %s1, 4294967283
  %54 = vst.msk [vmem:[%s53] ss:$8 sm:$0xc0] %vm46, %v45
  %s55 = scalar_lea.vmem %s0, 160
  %v56 = vld [vmem:[%s55] ss:$4 sm:$0xff]
  %vm57 = vcmask 261120
  %s58 = scalar_lea.vmem %s1, 36
  %59 = vst.msk [vmem:[%s58] ss:$8 sm:$0x3] %vm57, %v56
  %s60 = scalar_lea.vmem %s1, 21
  %61 = vst.msk [vmem:[%s60] ss:$8 sm:$0xc] %vm57, %v56
  %s62 = scalar_lea.vmem %s1, 6
  %63 = vst.msk [vmem:[%s62] ss:$8 sm:$0x30] %vm57, %v56
  %s64 = scalar_lea.vmem %s1, 4294967287
  %65 = vst.msk [vmem:[%s64] ss:$8 sm:$0xc0] %vm57, %v56
  %s66 = scalar_lea.vmem %s0, 192
  %v67 = vld [vmem:[%s66] ss:$4 sm:$0xff]
  %vm68 = vcmask 261120
  %s69 = scalar_lea.vmem %s1, 48
  %70 = vst.msk [vmem:[%s69] ss:$8 sm:$0x3] %vm68, %v67
  %s71 = scalar_lea.vmem %s1, 33
  %72 = vst.msk [vmem:[%s71] ss:$8 sm:$0xc] %vm68, %v67
  %s73 = scalar_lea.vmem %s1, 18
  %74 = vst.msk [vmem:[%s73] ss:$8 sm:$0x30] %vm68, %v67
  %s75 = scalar_lea.vmem %s1, 3
  %76 = vst.msk [vmem:[%s75] ss:$8 sm:$0xc0] %vm68, %v67
  %s77 = scalar_lea.vmem %s0, 224
  %v78 = vld [vmem:[%s77] ss:$4 sm:$0xff]
  %vm79 = vcmask 261120
  %s80 = scalar_lea.vmem %s1, 52
  %81 = vst.msk [vmem:[%s80] ss:$8 sm:$0x3] %vm79, %v78
  %s82 = scalar_lea.vmem %s1, 37
  %83 = vst.msk [vmem:[%s82] ss:$8 sm:$0xc] %vm79, %v78
  %s84 = scalar_lea.vmem %s1, 22
  %85 = vst.msk [vmem:[%s84] ss:$8 sm:$0x30] %vm79, %v78
  %s86 = scalar_lea.vmem %s1, 7
  %87 = vst.msk [vmem:[%s86] ss:$8 sm:$0xc0] %vm79, %v78
  %s88 = scalar_lea.vmem %s0, 3
  %v89 = vld [vmem:[%s88] ss:$8 sm:$0xf]
  %s90 = scalar_lea.vmem %s0, 3
  %v91 = vld [vmem:[%s90] ss:$8 sm:$0xf0]
  %vm92 = vcmask 1047556
  %v93 = vsel %vm92, %v91, %v89
  %94 = vrot.lane.b32.xlu0 %v93, 96
  %v95 = vpop.permute.xlu0 %94
  %vm96 = vcmask 1048320
  %97 = vst.msk [vmem:[%s1] sm:$0xff] %vm96, %v95
  %s98 = scalar_lea.vmem %s0, 131
  %v99 = vld [vmem:[%s98] ss:$8 sm:$0xf]
  %s100 = scalar_lea.vmem %s0, 131
  %v101 = vld [vmem:[%s100] ss:$8 sm:$0xf0]
  %vm102 = vcmask 1047556
  %v103 = vsel %vm102, %v101, %v99
  %104 = vrot.lane.b32.xlu0 %v103, 96
  %v105 = vpop.permute.xlu0 %104
  %vm106 = vcmask 1048320
  %s107 = scalar_lea.vmem %s1, 32
  %108 = vst.msk [vmem:[%s107] sm:$0xff] %vm106, %v105
  %s109 = scalar_lea.vmem %s0, 67
  %v110 = vld [vmem:[%s109] ss:$8 sm:$0xf]
  %s111 = scalar_lea.vmem %s0, 67
  %v112 = vld [vmem:[%s111] ss:$8 sm:$0xf0]
  %vm113 = vcmask 1047556
  %v114 = vsel %vm113, %v112, %v110
  %115 = vrot.lane.b32.xlu0 %v114, 96
  %v116 = vpop.permute.xlu0 %115
  %vm117 = vcmask 1048320
  %s118 = scalar_lea.vmem %s1, 16
  %119 = vst.msk [vmem:[%s118] sm:$0xff] %vm117, %v116
  %s120 = scalar_lea.vmem %s0, 195
  %v121 = vld [vmem:[%s120] ss:$8 sm:$0xf]
  %s122 = scalar_lea.vmem %s0, 195
  %v123 = vld [vmem:[%s122] ss:$8 sm:$0xf0]
  %vm124 = vcmask 1047556
  %v125 = vsel %vm124, %v123, %v121
  %126 = vrot.lane.b32.xlu0 %v125, 96
  %v127 = vpop.permute.xlu0 %126
  %vm128 = vcmask 1048320
  %s129 = scalar_lea.vmem %s1, 48
  %130 = vst.msk [vmem:[%s129] sm:$0xff] %vm128, %v127
  %s131 = scalar_lea.vmem %s0, 2
  %v132 = vld [vmem:[%s131] ss:$8 sm:$0xf]
  %s133 = scalar_lea.vmem %s0, 2
  %v134 = vld [vmem:[%s133] ss:$8 sm:$0xf0]
  %vm135 = vcmask 1047556
  %v136 = vsel %vm135, %v134, %v132
  %137 = vrot.lane.b32.xlu0 %v136, 64
  %v138 = vpop.permute.xlu0 %137
  %vm139 = vcmask 785920
  %140 = vst.msk [vmem:[%s1] sm:$0xff] %vm139, %v138
  %s141 = scalar_lea.vmem %s0, 130
  %v142 = vld [vmem:[%s141] ss:$8 sm:$0xf]
  %s143 = scalar_lea.vmem %s0, 130
  %v144 = vld [vmem:[%s143] ss:$8 sm:$0xf0]
  %vm145 = vcmask 1047556
  %v146 = vsel %vm145, %v144, %v142
  %147 = vrot.lane.b32.xlu0 %v146, 64
  %v148 = vpop.permute.xlu0 %147
  %vm149 = vcmask 785920
  %s150 = scalar_lea.vmem %s1, 32
  %151 = vst.msk [vmem:[%s150] sm:$0xff] %vm149, %v148
  %s152 = scalar_lea.vmem %s0, 66
  %v153 = vld [vmem:[%s152] ss:$8 sm:$0xf]
  %s154 = scalar_lea.vmem %s0, 66
  %v155 = vld [vmem:[%s154] ss:$8 sm:$0xf0]
  %vm156 = vcmask 1047556
  %v157 = vsel %vm156, %v155, %v153
  %158 = vrot.lane.b32.xlu0 %v157, 64
  %v159 = vpop.permute.xlu0 %158
  %vm160 = vcmask 785920
  %s161 = scalar_lea.vmem %s1, 16
  %162 = vst.msk [vmem:[%s161] sm:$0xff] %vm160, %v159
  %s163 = scalar_lea.vmem %s0, 194
  %v164 = vld [vmem:[%s163] ss:$8 sm:$0xf]
  %s165 = scalar_lea.vmem %s0, 194
  %v166 = vld [vmem:[%s165] ss:$8 sm:$0xf0]
  %vm167 = vcmask 1047556
  %v168 = vsel %vm167, %v166, %v164
  %169 = vrot.lane.b32.xlu0 %v168, 64
  %v170 = vpop.permute.xlu0 %169
  %vm171 = vcmask 785920
  %s172 = scalar_lea.vmem %s1, 48
  %173 = vst.msk [vmem:[%s172] sm:$0xff] %vm171, %v170
  %s174 = scalar_lea.vmem %s0, 1
  %v175 = vld [vmem:[%s174] ss:$8 sm:$0xf]
  %s176 = scalar_lea.vmem %s0, 1
  %v177 = vld [vmem:[%s176] ss:$8 sm:$0xf0]
  %vm178 = vcmask 1047556
  %v179 = vsel %vm178, %v177, %v175
  %180 = vrot.lane.b32.xlu0 %v179, 32
  %v181 = vpop.permute.xlu0 %180
  %vm182 = vcmask 523520
  %183 = vst.msk [vmem:[%s1] sm:$0xff] %vm182, %v181
  %s184 = scalar_lea.vmem %s0, 129
  %v185 = vld [vmem:[%s184] ss:$8 sm:$0xf]
  %s186 = scalar_lea.vmem %s0, 129
  %v187 = vld [vmem:[%s186] ss:$8 sm:$0xf0]
  %vm188 = vcmask 1047556
  %v189 = vsel %vm188, %v187, %v185
  %190 = vrot.lane.b32.xlu0 %v189, 32
  %v191 = vpop.permute.xlu0 %190
  %vm192 = vcmask 523520
  %s193 = scalar_lea.vmem %s1, 32
  %194 = vst.msk [vmem:[%s193] sm:$0xff] %vm192, %v191
  %s195 = scalar_lea.vmem %s0, 5
  %v196 = vld [vmem:[%s195] ss:$8 sm:$0xf]
  %s197 = scalar_lea.vmem %s0, 5
  %v198 = vld [vmem:[%s197] ss:$8 sm:$0xf0]
  %vm199 = vcmask 1047556
  %v200 = vsel %vm199, %v198, %v196
  %201 = vrot.lane.b32.xlu0 %v200, 32
  %v202 = vpop.permute.xlu0 %201
  %vm203 = vcmask 523520
  %s204 = scalar_lea.vmem %s1, 8
  %205 = vst.msk [vmem:[%s204] sm:$0xff] %vm203, %v202
  %s206 = scalar_lea.vmem %s0, 133
  %v207 = vld [vmem:[%s206] ss:$8 sm:$0xf]
  %s208 = scalar_lea.vmem %s0, 133
  %v209 = vld [vmem:[%s208] ss:$8 sm:$0xf0]
  %vm210 = vcmask 1047556
  %v211 = vsel %vm210, %v209, %v207
  %212 = vrot.lane.b32.xlu0 %v211, 32
  %v213 = vpop.permute.xlu0 %212
  %vm214 = vcmask 523520
  %s215 = scalar_lea.vmem %s1, 40
  %216 = vst.msk [vmem:[%s215] sm:$0xff] %vm214, %v213
  %s217 = scalar_lea.vmem %s0, 65
  %v218 = vld [vmem:[%s217] ss:$8 sm:$0xf]
  %s219 = scalar_lea.vmem %s0, 65
  %v220 = vld [vmem:[%s219] ss:$8 sm:$0xf0]
  %vm221 = vcmask 1047556
  %v222 = vsel %vm221, %v220, %v218
  %223 = vrot.lane.b32.xlu0 %v222, 32
  %v224 = vpop.permute.xlu0 %223
  %vm225 = vcmask 523520
  %s226 = scalar_lea.vmem %s1, 16
  %227 = vst.msk [vmem:[%s226] sm:$0xff] %vm225, %v224
  %s228 = scalar_lea.vmem %s0, 193
  %v229 = vld [vmem:[%s228] ss:$8 sm:$0xf]
  %s230 = scalar_lea.vmem %s0, 193
  %v231 = vld [vmem:[%s230] ss:$8 sm:$0xf0]
  %vm232 = vcmask 1047556
  %v233 = vsel %vm232, %v231, %v229
  %234 = vrot.lane.b32.xlu0 %v233, 32
  %v235 = vpop.permute.xlu0 %234
  %vm236 = vcmask 523520
  %s237 = scalar_lea.vmem %s1, 48
  %238 = vst.msk [vmem:[%s237] sm:$0xff] %vm236, %v235
  %s239 = scalar_lea.vmem %s0, 69
  %v240 = vld [vmem:[%s239] ss:$8 sm:$0xf]
  %s241 = scalar_lea.vmem %s0, 69
  %v242 = vld [vmem:[%s241] ss:$8 sm:$0xf0]
  %vm243 = vcmask 1047556
  %v244 = vsel %vm243, %v242, %v240
  %245 = vrot.lane.b32.xlu0 %v244, 32
  %v246 = vpop.permute.xlu0 %245
  %vm247 = vcmask 523520
  %s248 = scalar_lea.vmem %s1, 24
  %249 = vst.msk [vmem:[%s248] sm:$0xff] %vm247, %v246
  %s250 = scalar_lea.vmem %s0, 197
  %v251 = vld [vmem:[%s250] ss:$8 sm:$0xf]
  %s252 = scalar_lea.vmem %s0, 197
  %v253 = vld [vmem:[%s252] ss:$8 sm:$0xf0]
  %vm254 = vcmask 1047556
  %v255 = vsel %vm254, %v253, %v251
  %256 = vrot.lane.b32.xlu0 %v255, 32
  %v257 = vpop.permute.xlu0 %256
  %vm258 = vcmask 523520
  %s259 = scalar_lea.vmem %s1, 56
  %260 = vst.msk [vmem:[%s259] sm:$0xff] %vm258, %v257

// kernel: tile.28
$region0: #{tile.28}
  #allocation0 [shape = 's32[1]{0}', space=sflag, size = 0x4, scoped, tag = 'scoped memory for tile.28']
  %s0 = inlined_call_operand.vmem [shape: f32[32], index: 0, kind: input, shape index: {}]
  %s1 = inlined_call_operand.vmem [shape: f32[2,32], index: 1, kind: output, shape index: {}]
  // Predicated region
  $region2: #{tile.28} parent=0 // pred_check
    _
  $region3: #{tile.28} parent=0 // pred_check_branch
    %3 = sbr.rel (0) target = $region5
  $region4: #{tile.28} parent=0 // pred_region
    _
  $region5: #{tile.28} parent=0 // pred_fallthru
    _
  %v4 = vld [vmem:[%s0] ss:$0 sm:$0xff]
  %5 = vst [vmem:[%s1] sm:$0x3] %v4

// kernel: tile.29
$region0: #{tile.29}
  %s0 = inlined_call_operand.vmem [shape: f32[2,32], index: 0, kind: input, shape index: {}]
  %s1 = inlined_call_operand.vmem [shape: f32[64], index: 1, kind: output, shape index: {}]
  $region1: #{tile.29} parent=0
    #allocation0 [shape = 'u8[4096]{0}', space=vmem, size = 0x1000, scoped, tag = 'scoped mem for output reshape']
    #allocation1 [shape = 'u8[4096]{0}', space=vmem, size = 0x1000, scoped, tag = 'scoped mem for input reshape']
    %s3 = ssub.s32 4, 1
    %v4 = vld [vmem:[%s0] sm:%s3]
    %5 = vst [vmem:[#allocation1] sm:%s3] %v4
    %v6 = vld [vmem:[#allocation1] sm:$0x1]
    %vm7 = vcmask 261120
    %8 = vst.msk [vmem:[#allocation0] sm:$0x1] %vm7, %v6
    %s9 = scalar_lea.vmem [#allocation1], 1
    %v10 = vld [vmem:[%s9] sm:$0x1]
    %11 = vrot.lane.b32.xlu0 %v10, 32
    %v12 = vpop.permute.xlu0 %11
    %vm13 = vcmask 523520
    %14 = vst.msk [vmem:[#allocation0] sm:$0x1] %vm13, %v12
    %s16 = ssub.s32 2, 1
    %v17 = vld [vmem:[#allocation0] sm:%s16]
    %s19 = ssub.s32 2, 1
    %20 = vst [vmem:[%s1] sm:%s19] %v17

// kernel: encoder_for_pp.1
$region0: #{encoder_for_pp.1}
  #allocation0 [shape = 'u32[]', space=smem, size = 0x4, offset = 0x4, fixed_abs, tag = 'smem constant byte address 0x4 - core index']
  #allocation1 [shape = 'u32[72,128]{1,0:T(1,128)}', space=vmem, size = 0x9000, scoped, tag = 'internal scratch']
  %s0 = inlined_call_operand.vmem [shape: f32[2,24,64], index: 0, kind: input, shape index: {}]
  %s1 = inlined_call_operand.vmem [shape: f32[2,24,24], index: 1, kind: input, shape index: {}]
  %s2 = inlined_call_operand.vmem [shape: f32[2,64,32], index: 2, kind: input, shape index: {}]
  %s3 = inlined_call_operand.vmem [shape: f32[2,64,192], index: 3, kind: input, shape index: {}]
  %s4 = inlined_call_operand.vmem [shape: f32[2,1,192], index: 4, kind: input, shape index: {}]
  %s5 = inlined_call_operand.vmem [shape: f32[2,96,32], index: 5, kind: input, shape index: {}]
  %s6 = inlined_call_operand.vmem [shape: f32[2,64,32], index: 6, kind: input, shape index: {}]
  %s7 = inlined_call_operand.vmem [shape: f32[2,9,32], index: 7, kind: input, shape index: {}]
  %s8 = inlined_call_operand.vmem [shape: f32[48,32], index: 8, kind: output, shape index: {}]
  %s9 = sld [smem:[#allocation0]]
  $region65: #{encoder_for_pp.1} parent=0
    _
  %s11 = ssub.s32 1, %s9
  %s12 = scalar_select 0, %s11, %s9
  loop: start=0, step=1, limit=4
  $region2: #{encoder_for_pp.1} parent=0 // loop_pre_header
    _
  $region3: #{encoder_for_pp.1} parent=0 // loop_header
    %s14 = sphi 0, %s18
    %p15 = scmp.ge.s32.totalorder %s14, 4
    %s24 = sphi 0, %s26
    %s27 = sphi 0, %s24
    %s28 = sphi 0, %s27
    %s44 = sphi 0, %s28
    %s50 = sphi 0, %s52
    %s53 = sphi 0, %s50
    %s54 = sphi 0, %s53
    %s70 = sphi 0, %s54
    %s76 = sphi 0, %s78
    %s79 = sphi 0, %s76
    %s80 = sphi 0, %s79
    %s96 = sphi 0, %s80
    %s102 = sphi 0, %s104
    %s105 = sphi 0, %s102
    %s106 = sphi 0, %s105
    %s122 = sphi 0, %s106
    %s128 = sphi 0, %s130
    %s131 = sphi 0, %s128
    %s132 = sphi 0, %s131
    %s148 = sphi 0, %s132
    %s154 = sphi 0, %s156
    %s157 = sphi 0, %s154
    %s158 = sphi 0, %s157
    %s174 = sphi 0, %s158
    %s180 = sphi 0, %s182
    %s183 = sphi 0, %s180
    %s184 = sphi 0, %s183
    %s200 = sphi 0, %s184
    %s206 = sphi 0, %s208
    %s209 = sphi 0, %s206
    %s210 = sphi 0, %s209
    %s226 = sphi 0, %s210
    %s232 = sphi 0, %s234
    %s235 = sphi 0, %s232
    %s236 = sphi 0, %s235
    %s252 = sphi 0, %s236
  $region4: #{encoder_for_pp.1} parent=0 // loop_header_branch
    %17 = sbr.rel (%p15) target = $region8
  $region5: #{encoder_for_pp.1} parent=0 // loop_body
    %s19 = ssub.s32 %s14, 1
    %s20 = ssub.s32 %s14, 2
    %s21 = sadd.s32 %s14, 1
    %s22 = ssub.s32 %s14, %s21
    %p23 = scmp.eq.s32.totalorder %s22, 0
    %s25 = sadd.s32 %s24, 1
    %s26 = scalar_select %p23, %s24, %s25
    %p29 = pneg %p23
    %p30 = scmp.eq.s32.totalorder %s14, 1
    %p31 = por %p29, %p30
    %p32 = scmp.ne.s32.totalorder %s24, %s27
    %p33 = scmp.eq.s32.totalorder %s14, 0
    %p34 = por %p32, %p33
    %p35 = scmp.ne.s32.totalorder %s24, %s27
    %p36 = scmp.eq.s32.totalorder %s19, 1
    %p37 = por %p35, %p36
    %p38 = scmp.ne.s32.totalorder %s27, %s28
    %p39 = scmp.eq.s32.totalorder %s19, 0
    %p40 = por %p38, %p39
    %p41 = scmp.ne.s32.totalorder %s27, %s28
    %p42 = scmp.eq.s32.totalorder %s20, 1
    %p43 = por %p41, %p42
    %p45 = scmp.ne.s32.totalorder %s28, %s44
    %p46 = scmp.eq.s32.totalorder %s20, 0
    %p47 = por %p45, %p46
    %s48 = ssub.s32 %s14, %s21
    %p49 = scmp.eq.s32.totalorder %s48, 0
    %s51 = sadd.s32 %s50, 1
    %s52 = scalar_select %p49, %s50, %s51
    %p55 = pneg %p49
    %p56 = scmp.eq.s32.totalorder %s14, 1
    %p57 = por %p55, %p56
    %p58 = scmp.ne.s32.totalorder %s50, %s53
    %p59 = scmp.eq.s32.totalorder %s14, 0
    %p60 = por %p58, %p59
    %p61 = scmp.ne.s32.totalorder %s50, %s53
    %p62 = scmp.eq.s32.totalorder %s19, 1
    %p63 = por %p61, %p62
    %p64 = scmp.ne.s32.totalorder %s53, %s54
    %p65 = scmp.eq.s32.totalorder %s19, 0
    %p66 = por %p64, %p65
    %p67 = scmp.ne.s32.totalorder %s53, %s54
    %p68 = scmp.eq.s32.totalorder %s20, 1
    %p69 = por %p67, %p68
    %p71 = scmp.ne.s32.totalorder %s54, %s70
    %p72 = scmp.eq.s32.totalorder %s20, 0
    %p73 = por %p71, %p72
    %s74 = ssub.s32 %s14, %s21
    %p75 = scmp.eq.s32.totalorder %s74, 0
    %s77 = sadd.s32 %s76, 1
    %s78 = scalar_select %p75, %s76, %s77
    %p81 = pneg %p75
    %p82 = scmp.eq.s32.totalorder %s14, 1
    %p83 = por %p81, %p82
    %p84 = scmp.ne.s32.totalorder %s76, %s79
    %p85 = scmp.eq.s32.totalorder %s14, 0
    %p86 = por %p84, %p85
    %p87 = scmp.ne.s32.totalorder %s76, %s79
    %p88 = scmp.eq.s32.totalorder %s19, 1
    %p89 = por %p87, %p88
    %p90 = scmp.ne.s32.totalorder %s79, %s80
    %p91 = scmp.eq.s32.totalorder %s19, 0
    %p92 = por %p90, %p91
    %p93 = scmp.ne.s32.totalorder %s79, %s80
    %p94 = scmp.eq.s32.totalorder %s20, 1
    %p95 = por %p93, %p94
    %p97 = scmp.ne.s32.totalorder %s80, %s96
    %p98 = scmp.eq.s32.totalorder %s20, 0
    %p99 = por %p97, %p98
    %s100 = ssub.s32 %s14, %s21
    %p101 = scmp.eq.s32.totalorder %s100, 0
    %s103 = sadd.s32 %s102, 1
    %s104 = scalar_select %p101, %s102, %s103
    %p107 = pneg %p101
    %p108 = scmp.eq.s32.totalorder %s14, 1
    %p109 = por %p107, %p108
    %p110 = scmp.ne.s32.totalorder %s102, %s105
    %p111 = scmp.eq.s32.totalorder %s14, 0
    %p112 = por %p110, %p111
    %p113 = scmp.ne.s32.totalorder %s102, %s105
    %p114 = scmp.eq.s32.totalorder %s19, 1
    %p115 = por %p113, %p114
    %p116 = scmp.ne.s32.totalorder %s105, %s106
    %p117 = scmp.eq.s32.totalorder %s19, 0
    %p118 = por %p116, %p117
    %p119 = scmp.ne.s32.totalorder %s105, %s106
    %p120 = scmp.eq.s32.totalorder %s20, 1
    %p121 = por %p119, %p120
    %p123 = scmp.ne.s32.totalorder %s106, %s122
    %p124 = scmp.eq.s32.totalorder %s20, 0
    %p125 = por %p123, %p124
    %s126 = ssub.s32 %s14, %s21
    %p127 = scmp.eq.s32.totalorder %s126, 0
    %s129 = sadd.s32 %s128, 1
    %s130 = scalar_select %p127, %s128, %s129
    %p133 = pneg %p127
    %p134 = scmp.eq.s32.totalorder %s14, 1
    %p135 = por %p133, %p134
    %p136 = scmp.ne.s32.totalorder %s128, %s131
    %p137 = scmp.eq.s32.totalorder %s14, 0
    %p138 = por %p136, %p137
    %p139 = scmp.ne.s32.totalorder %s128, %s131
    %p140 = scmp.eq.s32.totalorder %s19, 1
    %p141 = por %p139, %p140
    %p142 = scmp.ne.s32.totalorder %s131, %s132
    %p143 = scmp.eq.s32.totalorder %s19, 0
    %p144 = por %p142, %p143
    %p145 = scmp.ne.s32.totalorder %s131, %s132
    %p146 = scmp.eq.s32.totalorder %s20, 1
    %p147 = por %p145, %p146
    %p149 = scmp.ne.s32.totalorder %s132, %s148
    %p150 = scmp.eq.s32.totalorder %s20, 0
    %p151 = por %p149, %p150
    %s152 = ssub.s32 %s14, %s21
    %p153 = scmp.eq.s32.totalorder %s152, 0
    %s155 = sadd.s32 %s154, 1
    %s156 = scalar_select %p153, %s154, %s155
    %p159 = pneg %p153
    %p160 = scmp.eq.s32.totalorder %s14, 1
    %p161 = por %p159, %p160
    %p162 = scmp.ne.s32.totalorder %s154, %s157
    %p163 = scmp.eq.s32.totalorder %s14, 0
    %p164 = por %p162, %p163
    %p165 = scmp.ne.s32.totalorder %s154, %s157
    %p166 = scmp.eq.s32.totalorder %s19, 1
    %p167 = por %p165, %p166
    %p168 = scmp.ne.s32.totalorder %s157, %s158
    %p169 = scmp.eq.s32.totalorder %s19, 0
    %p170 = por %p168, %p169
    %p171 = scmp.ne.s32.totalorder %s157, %s158
    %p172 = scmp.eq.s32.totalorder %s20, 1
    %p173 = por %p171, %p172
    %p175 = scmp.ne.s32.totalorder %s158, %s174
    %p176 = scmp.eq.s32.totalorder %s20, 0
    %p177 = por %p175, %p176
    %s178 = ssub.s32 %s14, %s21
    %p179 = scmp.eq.s32.totalorder %s178, 0
    %s181 = sadd.s32 %s180, 1
    %s182 = scalar_select %p179, %s180, %s181
    %p185 = pneg %p179
    %p186 = scmp.eq.s32.totalorder %s14, 1
    %p187 = por %p185, %p186
    %p188 = scmp.ne.s32.totalorder %s180, %s183
    %p189 = scmp.eq.s32.totalorder %s14, 0
    %p190 = por %p188, %p189
    %p191 = scmp.ne.s32.totalorder %s180, %s183
    %p192 = scmp.eq.s32.totalorder %s19, 1
    %p193 = por %p191, %p192
    %p194 = scmp.ne.s32.totalorder %s183, %s184
    %p195 = scmp.eq.s32.totalorder %s19, 0
    %p196 = por %p194, %p195
    %p197 = scmp.ne.s32.totalorder %s183, %s184
    %p198 = scmp.eq.s32.totalorder %s20, 1
    %p199 = por %p197, %p198
    %p201 = scmp.ne.s32.totalorder %s184, %s200
    %p202 = scmp.eq.s32.totalorder %s20, 0
    %p203 = por %p201, %p202
    %s204 = ssub.s32 %s14, %s21
    %p205 = scmp.eq.s32.totalorder %s204, 0
    %s207 = sadd.s32 %s206, 1
    %s208 = scalar_select %p205, %s206, %s207
    %p211 = pneg %p205
    %p212 = scmp.eq.s32.totalorder %s14, 1
    %p213 = por %p211, %p212
    %p214 = scmp.ne.s32.totalorder %s206, %s209
    %p215 = scmp.eq.s32.totalorder %s14, 0
    %p216 = por %p214, %p215
    %p217 = scmp.ne.s32.totalorder %s206, %s209
    %p218 = scmp.eq.s32.totalorder %s19, 1
    %p219 = por %p217, %p218
    %p220 = scmp.ne.s32.totalorder %s209, %s210
    %p221 = scmp.eq.s32.totalorder %s19, 0
    %p222 = por %p220, %p221
    %p223 = scmp.ne.s32.totalorder %s209, %s210
    %p224 = scmp.eq.s32.totalorder %s20, 1
    %p225 = por %p223, %p224
    %p227 = scmp.ne.s32.totalorder %s210, %s226
    %p228 = scmp.eq.s32.totalorder %s20, 0
    %p229 = por %p227, %p228
    %s230 = ssub.s32 %s14, %s21
    %p231 = scmp.eq.s32.totalorder %s230, 0
    %s233 = sadd.s32 %s232, 1
    %s234 = scalar_select %p231, %s232, %s233
    %p237 = pneg %p231
    %p238 = scmp.eq.s32.totalorder %s14, 1
    %p239 = por %p237, %p238
    %p240 = scmp.ne.s32.totalorder %s232, %s235
    %p241 = scmp.eq.s32.totalorder %s14, 0
    %p242 = por %p240, %p241
    %p243 = scmp.ne.s32.totalorder %s232, %s235
    %p244 = scmp.eq.s32.totalorder %s19, 1
    %p245 = por %p243, %p244
    %p246 = scmp.ne.s32.totalorder %s235, %s236
    %p247 = scmp.eq.s32.totalorder %s19, 0
    %p248 = por %p246, %p247
    %p249 = scmp.ne.s32.totalorder %s235, %s236
    %p250 = scmp.eq.s32.totalorder %s20, 1
    %p251 = por %p249, %p250
    %p253 = scmp.ne.s32.totalorder %s236, %s252
    %p254 = scmp.eq.s32.totalorder %s20, 0
    %p255 = por %p253, %p254
    %p256 = scmp.le.s32.totalorder 1, %s14
    %p257 = scmp.lt.s32.totalorder %s14, 3
    %p258 = pnand %p256, %p257
    %p259 = pneg %p258
    // Predicated region
    $region9: #{encoder_for_pp.1} parent=5 // pred_check
      _
    $region10: #{encoder_for_pp.1} parent=5 // pred_check_branch
      %261 = sbr.rel (%p258) target = $region12
    $region11: #{encoder_for_pp.1} parent=5 // pred_region
      %s262 = ssub.s32 %s14, 1
    $region12: #{encoder_for_pp.1} parent=5 // pred_fallthru
      _
    %p263 = scmp.lt.s32.totalorder %s14, 2
    // Predicated region
    $region13: #{encoder_for_pp.1} parent=5 // pred_check
      %p264 = pneg %p263
    $region14: #{encoder_for_pp.1} parent=5 // pred_check_branch
      %266 = sbr.rel (%p264) target = $region16
    $region15: #{encoder_for_pp.1} parent=5 // pred_region
      // Predicated region
      $region17: #{encoder_for_pp.1} parent=15 // pred_check
        %p267 = pneg %p34
      $region18: #{encoder_for_pp.1} parent=15 // pred_check_branch
        %269 = sbr.rel (%p267) target = $region20
      $region19: #{encoder_for_pp.1} parent=15 // pred_region
        %p270 = scmp.lt.s32.totalorder %s14, 1
        %s271 = scalar_select %p270, %s14, 1
        %s272 = smul.addr %s271, 3
        %s273 = smul.addr %s272, 8
        %s274 = scalar_lea.vmem %s0, %s273
      $region20: #{encoder_for_pp.1} parent=15 // pred_fallthru
        _
      // Predicated region
      $region21: #{encoder_for_pp.1} parent=15 // pred_check
        %p275 = pneg %p60
      $region22: #{encoder_for_pp.1} parent=15 // pred_check_branch
        %277 = sbr.rel (%p275) target = $region24
      $region23: #{encoder_for_pp.1} parent=15 // pred_region
        %p278 = scmp.lt.s32.totalorder %s14, 1
        %s279 = scalar_select %p278, %s14, 1
        %s280 = smul.addr %s279, 3
        %s281 = smul.addr %s280, 8
        %s282 = scalar_lea.vmem %s1, %s281
      $region24: #{encoder_for_pp.1} parent=15 // pred_fallthru
        _
      // Predicated region
      $region25: #{encoder_for_pp.1} parent=15 // pred_check
        %p283 = pneg %p86
      $region26: #{encoder_for_pp.1} parent=15 // pred_check_branch
        %285 = sbr.rel (%p283) target = $region28
      $region27: #{encoder_for_pp.1} parent=15 // pred_region
        %p286 = scmp.lt.s32.totalorder %s14, 1
        %s287 = scalar_select %p286, %s14, 1
        %s288 = smul.addr %s287, 8
        %s289 = smul.addr %s288, 8
        %s290 = scalar_lea.vmem %s2, %s289
      $region28: #{encoder_for_pp.1} parent=15 // pred_fallthru
        _
      // Predicated region
      $region29: #{encoder_for_pp.1} parent=15 // pred_check
        %p291 = pneg %p112
      $region30: #{encoder_for_pp.1} parent=15 // pred_check_branch
        %293 = sbr.rel (%p291) target = $region32
      $region31: #{encoder_for_pp.1} parent=15 // pred_region
        %p294 = scmp.lt.s32.totalorder %s14, 1
        %s295 = scalar_select %p294, %s14, 1
        %s296 = smul.addr %s295, 16
        %s297 = smul.addr %s296, 8
        %s298 = scalar_lea.vmem %s3, %s297
      $region32: #{encoder_for_pp.1} parent=15 // pred_fallthru
        _
      // Predicated region
      $region33: #{encoder_for_pp.1} parent=15 // pred_check
        %p299 = pneg %p138
      $region34: #{encoder_for_pp.1} parent=15 // pred_check_branch
        %301 = sbr.rel (%p299) target = $region36
      $region35: #{encoder_for_pp.1} parent=15 // pred_region
        %p302 = scmp.lt.s32.totalorder %s14, 1
        %s303 = scalar_select %p302, %s14, 1
        %s304 = smul.addr %s303, 2
        %s305 = scalar_lea.vmem %s4, %s304
      $region36: #{encoder_for_pp.1} parent=15 // pred_fallthru
        _
      // Predicated region
      $region37: #{encoder_for_pp.1} parent=15 // pred_check
        %p306 = pneg %p164
      $region38: #{encoder_for_pp.1} parent=15 // pred_check_branch
        %308 = sbr.rel (%p306) target = $region40
      $region39: #{encoder_for_pp.1} parent=15 // pred_region
        %p309 = scmp.lt.s32.totalorder %s14, 1
        %s310 = scalar_select %p309, %s14, 1
        %s311 = smul.addr %s310, 12
        %s312 = smul.addr %s311, 8
        %s313 = scalar_lea.vmem %s5, %s312
      $region40: #{encoder_for_pp.1} parent=15 // pred_fallthru
        _
      // Predicated region
      $region41: #{encoder_for_pp.1} parent=15 // pred_check
        %p314 = pneg %p190
      $region42: #{encoder_for_pp.1} parent=15 // pred_check_branch
        %316 = sbr.rel (%p314) target = $region44
      $region43: #{encoder_for_pp.1} parent=15 // pred_region
        %p317 = scmp.lt.s32.totalorder %s14, 1
        %s318 = scalar_select %p317, %s14, 1
        %s319 = smul.addr %s318, 8
        %s320 = smul.addr %s319, 8
        %s321 = scalar_lea.vmem %s6, %s320
      $region44: #{encoder_for_pp.1} parent=15 // pred_fallthru
        _
      // Predicated region
      $region45: #{encoder_for_pp.1} parent=15 // pred_check
        %p322 = pneg %p216
      $region46: #{encoder_for_pp.1} parent=15 // pred_check_branch
        %324 = sbr.rel (%p322) target = $region48
      $region47: #{encoder_for_pp.1} parent=15 // pred_region
        %p325 = scmp.lt.s32.totalorder %s14, 1
        %s326 = scalar_select %p325, %s14, 1
        %s327 = smul.addr %s326, 2
        %s328 = smul.addr %s327, 8
        %s329 = scalar_lea.vmem %s7, %s328
      $region48: #{encoder_for_pp.1} parent=15 // pred_fallthru
        _
    $region16: #{encoder_for_pp.1} parent=5 // pred_fallthru
      _
    %p330 = scmp.le.s32.totalorder 1, %s14
    %p331 = scmp.lt.s32.totalorder %s14, 3
    %p332 = pnand %p330, %p331
    %p333 = pneg %p332
    // Predicated region
    $region49: #{encoder_for_pp.1} parent=5 // pred_check
      _
    $region50: #{encoder_for_pp.1} parent=5 // pred_check_branch
      %335 = sbr.rel (%p332) target = $region52
    $region51: #{encoder_for_pp.1} parent=5 // pred_region
      %s336 = ssub.s32 %s14, 1
      %p337 = scmp.lt.s32.totalorder %s19, 1
      %s338 = scalar_select %p337, %s19, 1
      %s339 = smul.addr %s338, 3
      %s340 = smul.addr %s339, 8
      %s341 = scalar_lea.vmem %s0, %s340
      %p342 = pneg %p40
      %p343 = pneg %p37
      %p344 = scmp.lt.s32.totalorder %s19, 1
      %s345 = scalar_select %p344, %s19, 1
      %s346 = smul.addr %s345, 3
      %s347 = smul.addr %s346, 8
      %s348 = scalar_lea.vmem %s1, %s347
      %p349 = pneg %p66
      %p350 = pneg %p63
      %p351 = scmp.lt.s32.totalorder %s19, 1
      %s352 = scalar_select %p351, %s19, 1
      %s353 = smul.addr %s352, 8
      %s354 = smul.addr %s353, 8
      %s355 = scalar_lea.vmem %s2, %s354
      %p356 = pneg %p92
      %p357 = pneg %p89
      %p358 = scmp.lt.s32.totalorder %s19, 1
      %s359 = scalar_select %p358, %s19, 1
      %s360 = smul.addr %s359, 16
      %s361 = smul.addr %s360, 8
      %s362 = scalar_lea.vmem %s3, %s361
      %p363 = pneg %p118
      %p364 = pneg %p115
      %p365 = scmp.lt.s32.totalorder %s19, 1
      %s366 = scalar_select %p365, %s19, 1
      %s367 = smul.addr %s366, 2
      %s368 = scalar_lea.vmem %s4, %s367
      %p369 = pneg %p144
      %p370 = pneg %p141
      %p371 = scmp.lt.s32.totalorder %s19, 1
      %s372 = scalar_select %p371, %s19, 1
      %s373 = smul.addr %s372, 12
      %s374 = smul.addr %s373, 8
      %s375 = scalar_lea.vmem %s5, %s374
      %p376 = pneg %p170
      %p377 = pneg %p167
      %p378 = scmp.lt.s32.totalorder %s19, 1
      %s379 = scalar_select %p378, %s19, 1
      %s380 = smul.addr %s379, 8
      %s381 = smul.addr %s380, 8
      %s382 = scalar_lea.vmem %s6, %s381
      %p383 = pneg %p196
      %p384 = pneg %p193
      %p385 = scmp.lt.s32.totalorder %s19, 1
      %s386 = scalar_select %p385, %s19, 1
      %s387 = smul.addr %s386, 2
      %s388 = smul.addr %s387, 8
      %s389 = scalar_lea.vmem %s7, %s388
      %p390 = pneg %p222
      %p391 = pneg %p219
      %p392 = pneg %p248
      %p393 = pneg %p245
      %s394 = smul.u32 3, %s19
      %p395 = scmp.lt.s32.totalorder %s394, 5
      %s396 = scalar_select %p395, %s394, 5
      %s397 = smul.addr %s396, 8
      %s398 = scalar_lea.vmem %s8, %s397
      %p399 = scmp.lt.s32.totalorder %s19, 1
      %s400 = scalar_select %p399, %s19, 1
      %s401 = smul.addr %s400, 3
      %s402 = smul.addr %s401, 8
      %s403 = scalar_lea.vmem %s0, %s402
      %p404 = scmp.lt.s32.totalorder %s19, 1
      %s405 = scalar_select %p404, %s19, 1
      %s406 = smul.addr %s405, 3
      %s407 = smul.addr %s406, 8
      %s408 = scalar_lea.vmem %s1, %s407
      %p409 = scmp.lt.s32.totalorder %s19, 1
      %s410 = scalar_select %p409, %s19, 1
      %s411 = smul.addr %s410, 8
      %s412 = smul.addr %s411, 8
      %s413 = scalar_lea.vmem %s2, %s412
      %p414 = scmp.lt.s32.totalorder %s19, 1
      %s415 = scalar_select %p414, %s19, 1
      %s416 = smul.addr %s415, 16
      %s417 = smul.addr %s416, 8
      %s418 = scalar_lea.vmem %s3, %s417
      %p419 = scmp.lt.s32.totalorder %s19, 1
      %s420 = scalar_select %p419, %s19, 1
      %s421 = smul.addr %s420, 2
      %s422 = scalar_lea.vmem %s4, %s421
      %p423 = scmp.lt.s32.totalorder %s19, 1
      %s424 = scalar_select %p423, %s19, 1
      %s425 = smul.addr %s424, 12
      %s426 = smul.addr %s425, 8
      %s427 = scalar_lea.vmem %s5, %s426
      %p428 = scmp.lt.s32.totalorder %s19, 1
      %s429 = scalar_select %p428, %s19, 1
      %s430 = smul.addr %s429, 8
      %s431 = smul.addr %s430, 8
      %s432 = scalar_lea.vmem %s6, %s431
      %p433 = scmp.lt.s32.totalorder %s19, 1
      %s434 = scalar_select %p433, %s19, 1
      %s435 = smul.addr %s434, 2
      %s436 = smul.addr %s435, 8
      %s437 = scalar_lea.vmem %s7, %s436
      %s438 = smul.u32 3, %s19
      %p439 = scmp.lt.s32.totalorder %s438, 5
      %s440 = scalar_select %p439, %s438, 5
      %s441 = smul.addr %s440, 8
      %s442 = scalar_lea.vmem %s8, %s441
      %s443 = smul.u32 3, %s19
      %v444 = vld [vmem:[%s437] sm:$0xff]
      %v445 = vld [vmem:[%s437 + $0x8] sm:$0x1]
      %v446 = vld [vmem:[%s403] sm:$0xff]
      %v447 = vld [vmem:[%s403 + $0x8] sm:$0xff]
      %v448 = vld [vmem:[%s403 + $0x10] sm:$0xff]
      %v449 = vld [vmem:[%s413] sm:$0xff]
      %v450 = vld [vmem:[%s413 + $0x8] sm:$0xff]
      %v451 = vld [vmem:[%s413 + $0x10] sm:$0xff]
      %v452 = vld [vmem:[%s413 + $0x18] sm:$0xff]
      %v453 = vld [vmem:[%s413 + $0x20] sm:$0xff]
      %v454 = vld [vmem:[%s413 + $0x28] sm:$0xff]
      %v455 = vld [vmem:[%s413 + $0x30] sm:$0xff]
      %v456 = vld [vmem:[%s413 + $0x38] sm:$0xff]
      %v457 = vperm.slane %v444, 0
      %vm458 = vcmask 523264
      %v460 = vsel %vm458, %v446, 0
      %v463 = vsel %vm458, %v447, 0
      %v466 = vsel %vm458, %v448, 0
      %468 = vmatpush.msra.mxu0 0.0
      %469 = vmatpush.msra.mxu0 0.0
      %470 = vmatpush.msra.mxu0 0.0
      %471 = vmatpush.msra.mxu0 0.0
      %472 = vmatpush.msra.mxu0 0.0
      %473 = vmatpush.msra.mxu0 0.0
      %474 = vmatpush.msra.mxu0 0.0
      %475 = vmatpush.msra.mxu0 0.0
      %476 = vmatpush.msra.mxu0 %v456
      %477 = vmatpush.msra.mxu0 %v455
      %478 = vmatpush.msra.mxu0 %v454
      %479 = vmatpush.msra.mxu0 %v453
      %480 = vmatpush.msra.mxu0 %v452
      %481 = vmatpush.msra.mxu0 %v451
      %482 = vmatpush.msra.mxu0 %v450
      %483 = vmatpush.msra.mxu0 %v449
      %484 = vmatmul.f32.gmra.mxu0 %v460
      %v485 = vpop.f32.mrf.mxu0
      %v486 = vadd.f32 %v457, %v485
      %487 = vmatmul.f32.gmra.mxu0 %v463
      %v488 = vpop.f32.mrf.mxu0
      %v489 = vadd.f32 %v457, %v488
      %490 = vmatmul.f32.gmra.mxu0 %v466
      %v491 = vpop.f32.mrf.mxu0
      %v492 = vadd.f32 %v457, %v491
      %493 = vdwg.mxu0
      %v494 = vmax.f32 %v486, 0.0
      %v495 = vmax.f32 %v489, 0.0
      %v496 = vmax.f32 %v492, 0.0
      %vm497 = vcmask 261120
      %v498 = vsel %vm497, %v494, 0.0
      %499 = vadd.xlane.f32.xlu0 %v498
      %v500 = vpop.xlane.xlu0 %499
      %v501 = vsel %vm497, %v495, 0.0
      %502 = vadd.xlane.f32.xlu0 %v501
      %v503 = vpop.xlane.xlu0 %502
      %v504 = vsel %vm497, %v496, 0.0
      %505 = vadd.xlane.f32.xlu0 %v504
      %v506 = vpop.xlane.xlu0 %505
      %v507 = vrcp.pop 32.0
      %v508 = vmul.f32 32.0, %v507
      %v509 = vsub.f32 1.0, %v508
      %v510 = vmul.f32 %v507, %v509
      %v511 = vadd.f32 %v507, %v510
      %vm512 = vweird.f32 %v507
      %v513 = vsel %vm512, %v507, %v511
      %v514 = vmul.f32 %v500, %v513
      %v515 = vmul.f32 %v503, %v513
      %v516 = vmul.f32 %v506, %v513
      %v517 = vsub.f32 %v494, %v514
      %v518 = vsub.f32 %v495, %v515
      %v519 = vsub.f32 %v496, %v516
      %v520 = vmul.f32 %v517, %v517
      %v521 = vmul.f32 %v518, %v518
      %v522 = vmul.f32 %v519, %v519
      %v523 = vsel %vm497, %v520, 0.0
      %524 = vadd.xlane.f32.xlu0 %v523
      %v525 = vpop.xlane.xlu0 %524
      %v526 = vsel %vm497, %v521, 0.0
      %527 = vadd.xlane.f32.xlu0 %v526
      %v528 = vpop.xlane.xlu0 %527
      %v529 = vsel %vm497, %v522, 0.0
      %530 = vadd.xlane.f32.xlu0 %v529
      %v531 = vpop.xlane.xlu0 %530
      %v532 = vmul.f32 %v525, %v513
      %v533 = vmul.f32 %v528, %v513
      %v534 = vmul.f32 %v531, %v513
      %v535 = vadd.f32 %v532, 1e-05
      %v536 = vadd.f32 %v533, 1e-05
      %v537 = vadd.f32 %v534, 1e-05
      %v538 = vrsqrt.pop %v535
      %v539 = vmul.f32 %v538, %v535
      %v540 = vmul.f32 %v539, %v538
      %v541 = vmul.f32 0.5, %v540
      %v542 = vsub.f32 1.5, %v541
      %v543 = vmul.f32 %v538, %v542
      %vm544 = vweird.f32 %v535
      %vm545 = vweird.f32 %v538
      %vm546 = vmor %vm544, %vm545
      %v547 = vsel %vm546, %v538, %v543
      %v548 = vrsqrt.pop %v536
      %v549 = vmul.f32 %v548, %v536
      %v550 = vmul.f32 %v549, %v548
      %v551 = vmul.f32 0.5, %v550
      %v552 = vsub.f32 1.5, %v551
      %v553 = vmul.f32 %v548, %v552
      %vm554 = vweird.f32 %v536
      %vm555 = vweird.f32 %v548
      %vm556 = vmor %vm554, %vm555
      %v557 = vsel %vm556, %v548, %v553
      %v558 = vrsqrt.pop %v537
      %v559 = vmul.f32 %v558, %v537
      %v560 = vmul.f32 %v559, %v558
      %v561 = vmul.f32 0.5, %v560
      %v562 = vsub.f32 1.5, %v561
      %v563 = vmul.f32 %v558, %v562
      %vm564 = vweird.f32 %v537
      %vm565 = vweird.f32 %v558
      %vm566 = vmor %vm564, %vm565
      %v567 = vsel %vm566, %v558, %v563
      %v568 = vmul.f32 %v517, %v547
      %v569 = vmul.f32 %v518, %v557
      %v570 = vmul.f32 %v519, %v567
      %v571 = vperm.slane %v444, 1
      %v572 = vmul.f32 %v568, %v571
      %v573 = vmul.f32 %v569, %v571
      %v574 = vmul.f32 %v570, %v571
      %v575 = vperm.slane %v444, 2
      %v576 = vadd.f32 %v572, %v575
      %v577 = vadd.f32 %v573, %v575
      %v578 = vadd.f32 %v574, %v575
      %v579 = vld [vmem:[%s408] sm:$0xff]
      %v580 = vld [vmem:[%s408 + $0x8] sm:$0xff]
      %v581 = vld [vmem:[%s408 + $0x10] sm:$0xff]
      %vm582 = vcmask 195584
      %v584 = vsel %vm582, %v579, 0
      %v587 = vsel %vm582, %v580, 0
      %v590 = vsel %vm582, %v581, 0
      %592 = vmatpush.msra.mxu0 0.0
      %593 = vmatpush.msra.mxu0 0.0
      %594 = vmatpush.msra.mxu0 0.0
      %595 = vmatpush.msra.mxu0 0.0
      %596 = vmatpush.msra.mxu0 0.0
      %597 = vmatpush.msra.mxu0 0.0
      %598 = vmatpush.msra.mxu0 0.0
      %599 = vmatpush.msra.mxu0 0.0
      %600 = vmatpush.msra.mxu0 0.0
      %601 = vmatpush.msra.mxu0 0.0
      %602 = vmatpush.msra.mxu0 0.0
      %603 = vmatpush.msra.mxu0 0.0
      %604 = vmatpush.msra.mxu0 0.0
      %605 = vmatpush.msra.mxu0 %v578
      %606 = vmatpush.msra.mxu0 %v577
      %607 = vmatpush.msra.mxu0 %v576
      %608 = vmatmul.f32.gmra.mxu0 %v584
      %v609 = vpop.f32.mrf.mxu0
      %v610 = vadd.f32 0.0, %v609
      %611 = vmatmul.f32.gmra.mxu0 %v587
      %v612 = vpop.f32.mrf.mxu0
      %v613 = vadd.f32 0.0, %v612
      %614 = vmatmul.f32.gmra.mxu0 %v590
      %v615 = vpop.f32.mrf.mxu0
      %v616 = vadd.f32 0.0, %v615
      %617 = vdwg.mxu0
      %621 = vrot.lane.b32.xlu0 %v576, 32
      %v622 = vpop.permute.xlu0 %621
      %623 = vrot.lane.b32.xlu0 %v577, 32
      %v624 = vpop.permute.xlu0 %623
      %625 = vrot.lane.b32.xlu0 %v578, 32
      %v626 = vpop.permute.xlu0 %625
      %v630 = vsel %vm497, %v610, %v622
      %v631 = vsel %vm497, %v613, %v624
      %v632 = vsel %vm497, %v616, %v626
      %v633 = vld [vmem:[%s418] sm:$0xff]
      %v634 = vld [vmem:[%s418 + $0x8] sm:$0xff]
      %v635 = vld [vmem:[%s418 + $0x10] sm:$0xff]
      %v636 = vld [vmem:[%s418 + $0x18] sm:$0xff]
      %v637 = vld [vmem:[%s418 + $0x20] sm:$0xff]
      %v638 = vld [vmem:[%s418 + $0x28] sm:$0xff]
      %v639 = vld [vmem:[%s418 + $0x30] sm:$0xff]
      %v640 = vld [vmem:[%s418 + $0x38] sm:$0xff]
      %v641 = vld [vmem:[%s418 + $0x40] sm:$0xff]
      %v642 = vld [vmem:[%s418 + $0x48] sm:$0xff]
      %v643 = vld [vmem:[%s418 + $0x50] sm:$0xff]
      %v644 = vld [vmem:[%s418 + $0x58] sm:$0xff]
      %v645 = vld [vmem:[%s418 + $0x60] sm:$0xff]
      %v646 = vld [vmem:[%s418 + $0x68] sm:$0xff]
      %v647 = vld [vmem:[%s418 + $0x70] sm:$0xff]
      %v648 = vld [vmem:[%s418 + $0x78] sm:$0xff]
      %v649 = vld [vmem:[%s422] sm:$0x3]
      %v651 = vperm.slane %v649, 0
      %v652 = vperm.slane %v649, 1
      %v656 = vsel %vm458, %v630, 0
      %v659 = vsel %vm458, %v631, 0
      %v662 = vsel %vm458, %v632, 0
      %664 = vmatpush.msra.mxu0 0.0
      %665 = vmatpush.msra.mxu0 0.0
      %666 = vmatpush.msra.mxu0 0.0
      %667 = vmatpush.msra.mxu0 0.0
      %668 = vmatpush.msra.mxu0 0.0
      %669 = vmatpush.msra.mxu0 0.0
      %670 = vmatpush.msra.mxu0 0.0
      %671 = vmatpush.msra.mxu0 0.0
      %672 = vmatpush.msra.mxu0 %v647
      %673 = vmatpush.msra.mxu0 %v645
      %674 = vmatpush.msra.mxu0 %v643
      %675 = vmatpush.msra.mxu0 %v641
      %676 = vmatpush.msra.mxu0 %v639
      %677 = vmatpush.msra.mxu0 %v637
      %678 = vmatpush.msra.mxu0 %v635
      %679 = vmatpush.msra.mxu0 %v633
      %680 = vmatmul.f32.gmra.mxu0 %v656
      %v681 = vpop.f32.mrf.mxu0
      %v682 = vadd.f32 %v651, %v681
      %683 = vmatmul.f32.gmra.mxu0 %v659
      %v684 = vpop.f32.mrf.mxu0
      %v685 = vadd.f32 %v651, %v684
      %686 = vmatmul.f32.gmra.mxu0 %v662
      %v687 = vpop.f32.mrf.mxu0
      %v688 = vadd.f32 %v651, %v687
      %689 = vdwg.mxu0
      %690 = vmatpush.msra.mxu0 0.0
      %691 = vmatpush.msra.mxu0 0.0
      %692 = vmatpush.msra.mxu0 0.0
      %693 = vmatpush.msra.mxu0 0.0
      %694 = vmatpush.msra.mxu0 0.0
      %695 = vmatpush.msra.mxu0 0.0
      %696 = vmatpush.msra.mxu0 0.0
      %697 = vmatpush.msra.mxu0 0.0
      %698 = vmatpush.msra.mxu0 %v648
      %699 = vmatpush.msra.mxu0 %v646
      %700 = vmatpush.msra.mxu0 %v644
      %701 = vmatpush.msra.mxu0 %v642
      %702 = vmatpush.msra.mxu0 %v640
      %703 = vmatpush.msra.mxu0 %v638
      %704 = vmatpush.msra.mxu0 %v636
      %705 = vmatpush.msra.mxu0 %v634
      %706 = vmatmul.f32.gmra.mxu0 %v656
      %v707 = vpop.f32.mrf.mxu0
      %v708 = vadd.f32 %v652, %v707
      %709 = vmatmul.f32.gmra.mxu0 %v659
      %v710 = vpop.f32.mrf.mxu0
      %v711 = vadd.f32 %v652, %v710
      %712 = vmatmul.f32.gmra.mxu0 %v662
      %v713 = vpop.f32.mrf.mxu0
      %v714 = vadd.f32 %v652, %v713
      %715 = vdwg.mxu0
      %v716 = vmax.f32 %v682, 0.0
      %v717 = vmax.f32 %v708, 0.0
      %v718 = vmax.f32 %v685, 0.0
      %v719 = vmax.f32 %v711, 0.0
      %v720 = vmax.f32 %v688, 0.0
      %v721 = vmax.f32 %v714, 0.0
      %v722 = vld [vmem:[%s427] sm:$0xff]
      %v723 = vld [vmem:[%s427 + $0x8] sm:$0xff]
      %v724 = vld [vmem:[%s427 + $0x10] sm:$0xff]
      %v725 = vld [vmem:[%s427 + $0x18] sm:$0xff]
      %v726 = vld [vmem:[%s427 + $0x20] sm:$0xff]
      %v727 = vld [vmem:[%s427 + $0x28] sm:$0xff]
      %v728 = vld [vmem:[%s427 + $0x30] sm:$0xff]
      %v729 = vld [vmem:[%s427 + $0x38] sm:$0xff]
      %v730 = vld [vmem:[%s427 + $0x40] sm:$0xff]
      %v731 = vld [vmem:[%s427 + $0x48] sm:$0xff]
      %v732 = vld [vmem:[%s427 + $0x50] sm:$0xff]
      %v733 = vld [vmem:[%s427 + $0x58] sm:$0xff]
      %v734 = vperm.slane %v444, 6
      %v736 = vsel %vm497, %v716, 0
      %v739 = vsel %vm497, %v718, 0
      %v742 = vsel %vm497, %v720, 0
      %744 = vmatpush.msra.mxu0 0.0
      %745 = vmatpush.msra.mxu0 0.0
      %746 = vmatpush.msra.mxu0 0.0
      %747 = vmatpush.msra.mxu0 0.0
      %748 = vmatpush.msra.mxu0 0.0
      %749 = vmatpush.msra.mxu0 0.0
      %750 = vmatpush.msra.mxu0 0.0
      %751 = vmatpush.msra.mxu0 0.0
      %752 = vmatpush.msra.mxu0 0.0
      %753 = vmatpush.msra.mxu0 0.0
      %754 = vmatpush.msra.mxu0 0.0
      %755 = vmatpush.msra.mxu0 0.0
      %756 = vmatpush.msra.mxu0 %v725
      %757 = vmatpush.msra.mxu0 %v724
      %758 = vmatpush.msra.mxu0 %v723
      %759 = vmatpush.msra.mxu0 %v722
      %760 = vmatmul.f32.gmra.mxu0 %v736
      %v761 = vpop.f32.mrf.mxu0
      %v762 = vadd.f32 %v734, %v761
      %763 = vmatmul.f32.gmra.mxu0 %v739
      %v764 = vpop.f32.mrf.mxu0
      %v765 = vadd.f32 %v734, %v764
      %766 = vmatmul.f32.gmra.mxu0 %v742
      %v767 = vpop.f32.mrf.mxu0
      %v768 = vadd.f32 %v734, %v767
      %769 = vdwg.mxu0
      %770 = vrot.lane.b32.xlu0 %v716, 96
      %v771 = vpop.permute.xlu0 %770
      %772 = vrot.lane.b32.xlu0 %v718, 96
      %v773 = vpop.permute.xlu0 %772
      %774 = vrot.lane.b32.xlu0 %v720, 96
      %v775 = vpop.permute.xlu0 %774
      %v776 = vsel %vm497, %v771, 0
      %v778 = vsel %vm497, %v773, 0
      %v780 = vsel %vm497, %v775, 0
      %782 = vmatpush.msra.mxu0 0.0
      %783 = vmatpush.msra.mxu0 0.0
      %784 = vmatpush.msra.mxu0 0.0
      %785 = vmatpush.msra.mxu0 0.0
      %786 = vmatpush.msra.mxu0 0.0
      %787 = vmatpush.msra.mxu0 0.0
      %788 = vmatpush.msra.mxu0 0.0
      %789 = vmatpush.msra.mxu0 0.0
      %790 = vmatpush.msra.mxu0 0.0
      %791 = vmatpush.msra.mxu0 0.0
      %792 = vmatpush.msra.mxu0 0.0
      %793 = vmatpush.msra.mxu0 0.0
      %794 = vmatpush.msra.mxu0 %v725
      %795 = vmatpush.msra.mxu0 %v724
      %796 = vmatpush.msra.mxu0 %v723
      %797 = vmatpush.msra.mxu0 %v722
      %798 = vmatmul.f32.gmra.mxu0 %v776
      %v799 = vpop.f32.mrf.mxu0
      %v800 = vadd.f32 %v734, %v799
      %801 = vmatmul.f32.gmra.mxu0 %v778
      %v802 = vpop.f32.mrf.mxu0
      %v803 = vadd.f32 %v734, %v802
      %804 = vmatmul.f32.gmra.mxu0 %v780
      %v805 = vpop.f32.mrf.mxu0
      %v806 = vadd.f32 %v734, %v805
      %807 = vdwg.mxu0
      %v808 = vperm.slane %v444, 7
      %809 = vrot.lane.b32.xlu0 %v716, 64
      %v810 = vpop.permute.xlu0 %809
      %811 = vrot.lane.b32.xlu0 %v718, 64
      %v812 = vpop.permute.xlu0 %811
      %813 = vrot.lane.b32.xlu0 %v720, 64
      %v814 = vpop.permute.xlu0 %813
      %v815 = vsel %vm497, %v810, 0
      %v817 = vsel %vm497, %v812, 0
      %v819 = vsel %vm497, %v814, 0
      %821 = vmatpush.msra.mxu0 0.0
      %822 = vmatpush.msra.mxu0 0.0
      %823 = vmatpush.msra.mxu0 0.0
      %824 = vmatpush.msra.mxu0 0.0
      %825 = vmatpush.msra.mxu0 0.0
      %826 = vmatpush.msra.mxu0 0.0
      %827 = vmatpush.msra.mxu0 0.0
      %828 = vmatpush.msra.mxu0 0.0
      %829 = vmatpush.msra.mxu0 0.0
      %830 = vmatpush.msra.mxu0 0.0
      %831 = vmatpush.msra.mxu0 0.0
      %832 = vmatpush.msra.mxu0 0.0
      %833 = vmatpush.msra.mxu0 %v729
      %834 = vmatpush.msra.mxu0 %v728
      %835 = vmatpush.msra.mxu0 %v727
      %836 = vmatpush.msra.mxu0 %v726
      %837 = vmatmul.f32.gmra.mxu0 %v815
      %v838 = vpop.f32.mrf.mxu0
      %v839 = vadd.f32 %v808, %v838
      %840 = vmatmul.f32.gmra.mxu0 %v817
      %v841 = vpop.f32.mrf.mxu0
      %v842 = vadd.f32 %v808, %v841
      %843 = vmatmul.f32.gmra.mxu0 %v819
      %v844 = vpop.f32.mrf.mxu0
      %v845 = vadd.f32 %v808, %v844
      %846 = vdwg.mxu0
      %847 = vrot.lane.b32.xlu0 %v716, 32
      %v848 = vpop.permute.xlu0 %847
      %849 = vrot.lane.b32.xlu0 %v718, 32
      %v850 = vpop.permute.xlu0 %849
      %851 = vrot.lane.b32.xlu0 %v720, 32
      %v852 = vpop.permute.xlu0 %851
      %v853 = vsel %vm497, %v848, 0
      %v855 = vsel %vm497, %v850, 0
      %v857 = vsel %vm497, %v852, 0
      %859 = vmatpush.msra.mxu0 0.0
      %860 = vmatpush.msra.mxu0 0.0
      %861 = vmatpush.msra.mxu0 0.0
      %862 = vmatpush.msra.mxu0 0.0
      %863 = vmatpush.msra.mxu0 0.0
      %864 = vmatpush.msra.mxu0 0.0
      %865 = vmatpush.msra.mxu0 0.0
      %866 = vmatpush.msra.mxu0 0.0
      %867 = vmatpush.msra.mxu0 0.0
      %868 = vmatpush.msra.mxu0 0.0
      %869 = vmatpush.msra.mxu0 0.0
      %870 = vmatpush.msra.mxu0 0.0
      %871 = vmatpush.msra.mxu0 %v729
      %872 = vmatpush.msra.mxu0 %v728
      %873 = vmatpush.msra.mxu0 %v727
      %874 = vmatpush.msra.mxu0 %v726
      %875 = vmatmul.f32.gmra.mxu0 %v853
      %v876 = vpop.f32.mrf.mxu0
      %v877 = vadd.f32 %v808, %v876
      %878 = vmatmul.f32.gmra.mxu0 %v855
      %v879 = vpop.f32.mrf.mxu0
      %v880 = vadd.f32 %v808, %v879
      %881 = vmatmul.f32.gmra.mxu0 %v857
      %v882 = vpop.f32.mrf.mxu0
      %v883 = vadd.f32 %v808, %v882
      %884 = vdwg.mxu0
      %v885 = vperm.slane %v445, 0
      %v887 = vsel %vm497, %v717, 0
      %v890 = vsel %vm497, %v719, 0
      %v893 = vsel %vm497, %v721, 0
      %895 = vmatpush.msra.mxu0 0.0
      %896 = vmatpush.msra.mxu0 0.0
      %897 = vmatpush.msra.mxu0 0.0
      %898 = vmatpush.msra.mxu0 0.0
      %899 = vmatpush.msra.mxu0 0.0
      %900 = vmatpush.msra.mxu0 0.0
      %901 = vmatpush.msra.mxu0 0.0
      %902 = vmatpush.msra.mxu0 0.0
      %903 = vmatpush.msra.mxu0 0.0
      %904 = vmatpush.msra.mxu0 0.0
      %905 = vmatpush.msra.mxu0 0.0
      %906 = vmatpush.msra.mxu0 0.0
      %907 = vmatpush.msra.mxu0 %v733
      %908 = vmatpush.msra.mxu0 %v732
      %909 = vmatpush.msra.mxu0 %v731
      %910 = vmatpush.msra.mxu0 %v730
      %911 = vmatmul.f32.gmra.mxu0 %v887
      %v912 = vpop.f32.mrf.mxu0
      %v913 = vadd.f32 %v885, %v912
      %914 = vmatmul.f32.gmra.mxu0 %v890
      %v915 = vpop.f32.mrf.mxu0
      %v916 = vadd.f32 %v885, %v915
      %917 = vmatmul.f32.gmra.mxu0 %v893
      %v918 = vpop.f32.mrf.mxu0
      %v919 = vadd.f32 %v885, %v918
      %920 = vdwg.mxu0
      %921 = vrot.lane.b32.xlu0 %v717, 96
      %v922 = vpop.permute.xlu0 %921
      %923 = vrot.lane.b32.xlu0 %v719, 96
      %v924 = vpop.permute.xlu0 %923
      %925 = vrot.lane.b32.xlu0 %v721, 96
      %v926 = vpop.permute.xlu0 %925
      %v927 = vsel %vm497, %v922, 0
      %v929 = vsel %vm497, %v924, 0
      %v931 = vsel %vm497, %v926, 0
      %933 = vmatpush.msra.mxu0 0.0
      %934 = vmatpush.msra.mxu0 0.0
      %935 = vmatpush.msra.mxu0 0.0
      %936 = vmatpush.msra.mxu0 0.0
      %937 = vmatpush.msra.mxu0 0.0
      %938 = vmatpush.msra.mxu0 0.0
      %939 = vmatpush.msra.mxu0 0.0
      %940 = vmatpush.msra.mxu0 0.0
      %941 = vmatpush.msra.mxu0 0.0
      %942 = vmatpush.msra.mxu0 0.0
      %943 = vmatpush.msra.mxu0 0.0
      %944 = vmatpush.msra.mxu0 0.0
      %945 = vmatpush.msra.mxu0 %v733
      %946 = vmatpush.msra.mxu0 %v732
      %947 = vmatpush.msra.mxu0 %v731
      %948 = vmatpush.msra.mxu0 %v730
      %949 = vmatmul.f32.gmra.mxu0 %v927
      %v950 = vpop.f32.mrf.mxu0
      %v951 = vadd.f32 %v885, %v950
      %952 = vmatmul.f32.gmra.mxu0 %v929
      %v953 = vpop.f32.mrf.mxu0
      %v954 = vadd.f32 %v885, %v953
      %955 = vmatmul.f32.gmra.mxu0 %v931
      %v956 = vpop.f32.mrf.mxu0
      %v957 = vadd.f32 %v885, %v956
      %958 = vdwg.mxu0
      %v959 = vld [vmem:[%s432] sm:$0xff]
      %v960 = vld [vmem:[%s432 + $0x8] sm:$0xff]
      %v961 = vld [vmem:[%s432 + $0x10] sm:$0xff]
      %v962 = vld [vmem:[%s432 + $0x18] sm:$0xff]
      %v963 = vld [vmem:[%s432 + $0x20] sm:$0xff]
      %v964 = vld [vmem:[%s432 + $0x28] sm:$0xff]
      %v965 = vld [vmem:[%s432 + $0x30] sm:$0xff]
      %v966 = vld [vmem:[%s432 + $0x38] sm:$0xff]
      %v967 = vmul.f32 %v762, %v839
      %v968 = vmul.f32 %v765, %v842
      %v969 = vmul.f32 %v768, %v845
      %vm970 = vcmask 130048
      %v971 = vsel %vm970, %v967, 0.0
      %972 = vadd.xlane.f32.xlu0 %v971
      %v973 = vpop.xlane.xlu0 %972
      %v974 = vsel %vm970, %v968, 0.0
      %975 = vadd.xlane.f32.xlu0 %v974
      %v976 = vpop.xlane.xlu0 %975
      %v977 = vsel %vm970, %v969, 0.0
      %978 = vadd.xlane.f32.xlu0 %v977
      %v979 = vpop.xlane.xlu0 %978
      %v980 = vmul.f32 %v973, 0.25
      %v981 = vmul.f32 %v976, 0.25
      %v982 = vmul.f32 %v979, 0.25
      %v983 = vmul.f32 %v762, %v877
      %v984 = vmul.f32 %v765, %v880
      %v985 = vmul.f32 %v768, %v883
      %v986 = vsel %vm970, %v983, 0.0
      %987 = vadd.xlane.f32.xlu0 %v986
      %v988 = vpop.xlane.xlu0 %987
      %v989 = vsel %vm970, %v984, 0.0
      %990 = vadd.xlane.f32.xlu0 %v989
      %v991 = vpop.xlane.xlu0 %990
      %v992 = vsel %vm970, %v985, 0.0
      %993 = vadd.xlane.f32.xlu0 %v992
      %v994 = vpop.xlane.xlu0 %993
      %v995 = vmul.f32 %v988, 0.25
      %v996 = vmul.f32 %v991, 0.25
      %v997 = vmul.f32 %v994, 0.25
      %v998 = vmax.f32 %v980, %v995
      %v999 = vmax.f32 %v981, %v996
      %v1000 = vmax.f32 %v982, %v997
      %v1001 = vsub.f32 %v980, %v998
      %v1002 = vsub.f32 %v981, %v999
      %v1003 = vsub.f32 %v982, %v1000
      %v1004 = vmul.f32 %v1001, 1.442695
      %v1005 = vpow.pop %v1004
      %v1006 = vmul.f32 %v1002, 1.442695
      %v1007 = vpow.pop %v1006
      %v1008 = vmul.f32 %v1003, 1.442695
      %v1009 = vpow.pop %v1008
      %v1010 = vsub.f32 %v995, %v998
      %v1011 = vsub.f32 %v996, %v999
      %v1012 = vsub.f32 %v997, %v1000
      %v1013 = vmul.f32 %v1010, 1.442695
      %v1014 = vpow.pop %v1013
      %v1015 = vmul.f32 %v1011, 1.442695
      %v1016 = vpow.pop %v1015
      %v1017 = vmul.f32 %v1012, 1.442695
      %v1018 = vpow.pop %v1017
      %v1019 = vadd.f32 %v1005, %v1014
      %v1020 = vadd.f32 %v1007, %v1016
      %v1021 = vadd.f32 %v1009, %v1018
      %v1022 = vrcp.pop %v1019
      %v1023 = vmul.f32 %v1019, %v1022
      %v1024 = vsub.f32 1.0, %v1023
      %v1025 = vmul.f32 %v1022, %v1024
      %v1026 = vadd.f32 %v1022, %v1025
      %vm1027 = vweird.f32 %v1019
      %vm1028 = vweird.f32 %v1022
      %vm1029 = vmor %vm1027, %vm1028
      %v1030 = vsel %vm1029, %v1022, %v1026
      %v1031 = vand.u32 2147483647, %v1019
      %vm1032 = vcmp.eq.f32.partialorder %v1031, 8.507059e+37
      %v1033 = vand.u32 %v1019, 2147483648
      %v1034 = vor.u32 1.1754944e-38, %v1033
      %v1035 = vsel %vm1032, %v1034, %v1030
      %v1036 = vmul.f32 1.0, %v1035
      %v1037 = vrcp.pop %v1020
      %v1038 = vmul.f32 %v1020, %v1037
      %v1039 = vsub.f32 1.0, %v1038
      %v1040 = vmul.f32 %v1037, %v1039
      %v1041 = vadd.f32 %v1037, %v1040
      %vm1042 = vweird.f32 %v1020
      %vm1043 = vweird.f32 %v1037
      %vm1044 = vmor %vm1042, %vm1043
      %v1045 = vsel %vm1044, %v1037, %v1041
      %v1046 = vand.u32 2147483647, %v1020
      %vm1047 = vcmp.eq.f32.partialorder %v1046, 8.507059e+37
      %v1048 = vand.u32 %v1020, 2147483648
      %v1049 = vor.u32 1.1754944e-38, %v1048
      %v1050 = vsel %vm1047, %v1049, %v1045
      %v1051 = vmul.f32 1.0, %v1050
      %v1052 = vrcp.pop %v1021
      %v1053 = vmul.f32 %v1021, %v1052
      %v1054 = vsub.f32 1.0, %v1053
      %v1055 = vmul.f32 %v1052, %v1054
      %v1056 = vadd.f32 %v1052, %v1055
      %vm1057 = vweird.f32 %v1021
      %vm1058 = vweird.f32 %v1052
      %vm1059 = vmor %vm1057, %vm1058
      %v1060 = vsel %vm1059, %v1052, %v1056
      %v1061 = vand.u32 2147483647, %v1021
      %vm1062 = vcmp.eq.f32.partialorder %v1061, 8.507059e+37
      %v1063 = vand.u32 %v1021, 2147483648
      %v1064 = vor.u32 1.1754944e-38, %v1063
      %v1065 = vsel %vm1062, %v1064, %v1060
      %v1066 = vmul.f32 1.0, %v1065
      %v1067 = vmul.f32 %v1005, %v1036
      %v1068 = vmul.f32 %v1007, %v1051
      %v1069 = vmul.f32 %v1009, %v1066
      %v1070 = vmul.f32 %v1067, %v913
      %v1071 = vmul.f32 %v1068, %v916
      %v1072 = vmul.f32 %v1069, %v919
      %v1073 = vmul.f32 %v1014, %v1036
      %v1074 = vmul.f32 %v1016, %v1051
      %v1075 = vmul.f32 %v1018, %v1066
      %v1076 = vmul.f32 %v1073, %v951
      %v1077 = vmul.f32 %v1074, %v954
      %v1078 = vmul.f32 %v1075, %v957
      %v1079 = vadd.f32 %v1070, %v1076
      %v1080 = vadd.f32 %v1071, %v1077
      %v1081 = vadd.f32 %v1072, %v1078
      %v1082 = vmul.f32 %v800, %v839
      %v1083 = vmul.f32 %v803, %v842
      %v1084 = vmul.f32 %v806, %v845
      %v1085 = vsel %vm970, %v1082, 0.0
      %1086 = vadd.xlane.f32.xlu0 %v1085
      %v1087 = vpop.xlane.xlu0 %1086
      %v1088 = vsel %vm970, %v1083, 0.0
      %1089 = vadd.xlane.f32.xlu0 %v1088
      %v1090 = vpop.xlane.xlu0 %1089
      %v1091 = vsel %vm970, %v1084, 0.0
      %1092 = vadd.xlane.f32.xlu0 %v1091
      %v1093 = vpop.xlane.xlu0 %1092
      %v1094 = vmul.f32 %v1087, 0.25
      %v1095 = vmul.f32 %v1090, 0.25
      %v1096 = vmul.f32 %v1093, 0.25
      %v1097 = vmul.f32 %v800, %v877
      %v1098 = vmul.f32 %v803, %v880
      %v1099 = vmul.f32 %v806, %v883
      %v1100 = vsel %vm970, %v1097, 0.0
      %1101 = vadd.xlane.f32.xlu0 %v1100
      %v1102 = vpop.xlane.xlu0 %1101
      %v1103 = vsel %vm970, %v1098, 0.0
      %1104 = vadd.xlane.f32.xlu0 %v1103
      %v1105 = vpop.xlane.xlu0 %1104
      %v1106 = vsel %vm970, %v1099, 0.0
      %1107 = vadd.xlane.f32.xlu0 %v1106
      %v1108 = vpop.xlane.xlu0 %1107
      %v1109 = vmul.f32 %v1102, 0.25
      %v1110 = vmul.f32 %v1105, 0.25
      %v1111 = vmul.f32 %v1108, 0.25
      %v1112 = vmax.f32 %v1094, %v1109
      %v1113 = vmax.f32 %v1095, %v1110
      %v1114 = vmax.f32 %v1096, %v1111
      %v1115 = vsub.f32 %v1094, %v1112
      %v1116 = vsub.f32 %v1095, %v1113
      %v1117 = vsub.f32 %v1096, %v1114
      %v1118 = vmul.f32 %v1115, 1.442695
      %v1119 = vpow.pop %v1118
      %v1120 = vmul.f32 %v1116, 1.442695
      %v1121 = vpow.pop %v1120
      %v1122 = vmul.f32 %v1117, 1.442695
      %v1123 = vpow.pop %v1122
      %v1124 = vsub.f32 %v1109, %v1112
      %v1125 = vsub.f32 %v1110, %v1113
      %v1126 = vsub.f32 %v1111, %v1114
      %v1127 = vmul.f32 %v1124, 1.442695
      %v1128 = vpow.pop %v1127
      %v1129 = vmul.f32 %v1125, 1.442695
      %v1130 = vpow.pop %v1129
      %v1131 = vmul.f32 %v1126, 1.442695
      %v1132 = vpow.pop %v1131
      %v1133 = vadd.f32 %v1119, %v1128
      %v1134 = vadd.f32 %v1121, %v1130
      %v1135 = vadd.f32 %v1123, %v1132
      %v1136 = vrcp.pop %v1133
      %v1137 = vmul.f32 %v1133, %v1136
      %v1138 = vsub.f32 1.0, %v1137
      %v1139 = vmul.f32 %v1136, %v1138
      %v1140 = vadd.f32 %v1136, %v1139
      %vm1141 = vweird.f32 %v1133
      %vm1142 = vweird.f32 %v1136
      %vm1143 = vmor %vm1141, %vm1142
      %v1144 = vsel %vm1143, %v1136, %v1140
      %v1145 = vand.u32 2147483647, %v1133
      %vm1146 = vcmp.eq.f32.partialorder %v1145, 8.507059e+37
      %v1147 = vand.u32 %v1133, 2147483648
      %v1148 = vor.u32 1.1754944e-38, %v1147
      %v1149 = vsel %vm1146, %v1148, %v1144
      %v1150 = vmul.f32 1.0, %v1149
      %v1151 = vrcp.pop %v1134
      %v1152 = vmul.f32 %v1134, %v1151
      %v1153 = vsub.f32 1.0, %v1152
      %v1154 = vmul.f32 %v1151, %v1153
      %v1155 = vadd.f32 %v1151, %v1154
      %vm1156 = vweird.f32 %v1134
      %vm1157 = vweird.f32 %v1151
      %vm1158 = vmor %vm1156, %vm1157
      %v1159 = vsel %vm1158, %v1151, %v1155
      %v1160 = vand.u32 2147483647, %v1134
      %vm1161 = vcmp.eq.f32.partialorder %v1160, 8.507059e+37
      %v1162 = vand.u32 %v1134, 2147483648
      %v1163 = vor.u32 1.1754944e-38, %v1162
      %v1164 = vsel %vm1161, %v1163, %v1159
      %v1165 = vmul.f32 1.0, %v1164
      %v1166 = vrcp.pop %v1135
      %v1167 = vmul.f32 %v1135, %v1166
      %v1168 = vsub.f32 1.0, %v1167
      %v1169 = vmul.f32 %v1166, %v1168
      %v1170 = vadd.f32 %v1166, %v1169
      %vm1171 = vweird.f32 %v1135
      %vm1172 = vweird.f32 %v1166
      %vm1173 = vmor %vm1171, %vm1172
      %v1174 = vsel %vm1173, %v1166, %v1170
      %v1175 = vand.u32 2147483647, %v1135
      %vm1176 = vcmp.eq.f32.partialorder %v1175, 8.507059e+37
      %v1177 = vand.u32 %v1135, 2147483648
      %v1178 = vor.u32 1.1754944e-38, %v1177
      %v1179 = vsel %vm1176, %v1178, %v1174
      %v1180 = vmul.f32 1.0, %v1179
      %v1181 = vmul.f32 %v1119, %v1150
      %v1182 = vmul.f32 %v1121, %v1165
      %v1183 = vmul.f32 %v1123, %v1180
      %v1184 = vmul.f32 %v1181, %v913
      %v1185 = vmul.f32 %v1182, %v916
      %v1186 = vmul.f32 %v1183, %v919
      %v1187 = vmul.f32 %v1128, %v1150
      %v1188 = vmul.f32 %v1130, %v1165
      %v1189 = vmul.f32 %v1132, %v1180
      %v1190 = vmul.f32 %v1187, %v951
      %v1191 = vmul.f32 %v1188, %v954
      %v1192 = vmul.f32 %v1189, %v957
      %v1193 = vadd.f32 %v1184, %v1190
      %v1194 = vadd.f32 %v1185, %v1191
      %v1195 = vadd.f32 %v1186, %v1192
      %v1197 = vsel %vm970, %v1193, 0
      %v1200 = vsel %vm970, %v1194, 0
      %v1203 = vsel %vm970, %v1195, 0
      %1205 = vmatpush.msra.mxu0 0.0
      %1206 = vmatpush.msra.mxu0 0.0
      %1207 = vmatpush.msra.mxu0 0.0
      %1208 = vmatpush.msra.mxu0 0.0
      %1209 = vmatpush.msra.mxu0 0.0
      %1210 = vmatpush.msra.mxu0 0.0
      %1211 = vmatpush.msra.mxu0 0.0
      %1212 = vmatpush.msra.mxu0 0.0
      %1213 = vmatpush.msra.mxu0 0.0
      %1214 = vmatpush.msra.mxu0 0.0
      %1215 = vmatpush.msra.mxu0 0.0
      %1216 = vmatpush.msra.mxu0 0.0
      %1217 = vmatpush.msra.mxu0 0.0
      %1218 = vmatpush.msra.mxu0 0.0
      %1219 = vmatpush.msra.mxu0 %v964
      %1220 = vmatpush.msra.mxu0 %v963
      %1221 = vmatmul.f32.gmra.mxu0 %v1197
      %v1222 = vpop.f32.mrf.mxu0
      %v1223 = vadd.f32 0.0, %v1222
      %1224 = vmatmul.f32.gmra.mxu0 %v1200
      %v1225 = vpop.f32.mrf.mxu0
      %v1226 = vadd.f32 0.0, %v1225
      %1227 = vmatmul.f32.gmra.mxu0 %v1203
      %v1228 = vpop.f32.mrf.mxu0
      %v1229 = vadd.f32 0.0, %v1228
      %1230 = vdwg.mxu0
      %v1232 = vsel %vm970, %v1079, 0
      %v1235 = vsel %vm970, %v1080, 0
      %v1238 = vsel %vm970, %v1081, 0
      %1240 = vmatpush.msra.mxu0 0.0
      %1241 = vmatpush.msra.mxu0 0.0
      %1242 = vmatpush.msra.mxu0 0.0
      %1243 = vmatpush.msra.mxu0 0.0
      %1244 = vmatpush.msra.mxu0 0.0
      %1245 = vmatpush.msra.mxu0 0.0
      %1246 = vmatpush.msra.mxu0 0.0
      %1247 = vmatpush.msra.mxu0 0.0
      %1248 = vmatpush.msra.mxu0 0.0
      %1249 = vmatpush.msra.mxu0 0.0
      %1250 = vmatpush.msra.mxu0 0.0
      %1251 = vmatpush.msra.mxu0 0.0
      %1252 = vmatpush.msra.mxu0 0.0
      %1253 = vmatpush.msra.mxu0 0.0
      %1254 = vmatpush.msra.mxu0 %v960
      %1255 = vmatpush.msra.mxu0 %v959
      %1256 = vmatmul.f32.gmra.mxu0 %v1232
      %v1257 = vpop.f32.mrf.mxu0
      %v1258 = vadd.f32 %v1223, %v1257
      %1259 = vmatmul.f32.gmra.mxu0 %v1235
      %v1260 = vpop.f32.mrf.mxu0
      %v1261 = vadd.f32 %v1226, %v1260
      %1262 = vmatmul.f32.gmra.mxu0 %v1238
      %v1263 = vpop.f32.mrf.mxu0
      %v1264 = vadd.f32 %v1229, %v1263
      %1265 = vdwg.mxu0
      %1269 = vrot.lane.b32.xlu0 %v967, 112
      %v1270 = vpop.permute.xlu0 %1269
      %1271 = vrot.lane.b32.xlu0 %v968, 112
      %v1272 = vpop.permute.xlu0 %1271
      %1273 = vrot.lane.b32.xlu0 %v969, 112
      %v1274 = vpop.permute.xlu0 %1273
      %v1278 = vsel %vm970, %v1270, 0.0
      %1279 = vadd.xlane.f32.xlu0 %v1278
      %v1280 = vpop.xlane.xlu0 %1279
      %v1281 = vsel %vm970, %v1272, 0.0
      %1282 = vadd.xlane.f32.xlu0 %v1281
      %v1283 = vpop.xlane.xlu0 %1282
      %v1284 = vsel %vm970, %v1274, 0.0
      %1285 = vadd.xlane.f32.xlu0 %v1284
      %v1286 = vpop.xlane.xlu0 %1285
      %v1287 = vmul.f32 %v1280, 0.25
      %v1288 = vmul.f32 %v1283, 0.25
      %v1289 = vmul.f32 %v1286, 0.25
      %1293 = vrot.lane.b32.xlu0 %v983, 112
      %v1294 = vpop.permute.xlu0 %1293
      %1295 = vrot.lane.b32.xlu0 %v984, 112
      %v1296 = vpop.permute.xlu0 %1295
      %1297 = vrot.lane.b32.xlu0 %v985, 112
      %v1298 = vpop.permute.xlu0 %1297
      %v1302 = vsel %vm970, %v1294, 0.0
      %1303 = vadd.xlane.f32.xlu0 %v1302
      %v1304 = vpop.xlane.xlu0 %1303
      %v1305 = vsel %vm970, %v1296, 0.0
      %1306 = vadd.xlane.f32.xlu0 %v1305
      %v1307 = vpop.xlane.xlu0 %1306
      %v1308 = vsel %vm970, %v1298, 0.0
      %1309 = vadd.xlane.f32.xlu0 %v1308
      %v1310 = vpop.xlane.xlu0 %1309
      %v1311 = vmul.f32 %v1304, 0.25
      %v1312 = vmul.f32 %v1307, 0.25
      %v1313 = vmul.f32 %v1310, 0.25
      %v1314 = vmax.f32 %v1287, %v1311
      %v1315 = vmax.f32 %v1288, %v1312
      %v1316 = vmax.f32 %v1289, %v1313
      %v1317 = vsub.f32 %v1287, %v1314
      %v1318 = vsub.f32 %v1288, %v1315
      %v1319 = vsub.f32 %v1289, %v1316
      %v1320 = vmul.f32 %v1317, 1.442695
      %v1321 = vpow.pop %v1320
      %v1322 = vmul.f32 %v1318, 1.442695
      %v1323 = vpow.pop %v1322
      %v1324 = vmul.f32 %v1319, 1.442695
      %v1325 = vpow.pop %v1324
      %v1326 = vsub.f32 %v1311, %v1314
      %v1327 = vsub.f32 %v1312, %v1315
      %v1328 = vsub.f32 %v1313, %v1316
      %v1329 = vmul.f32 %v1326, 1.442695
      %v1330 = vpow.pop %v1329
      %v1331 = vmul.f32 %v1327, 1.442695
      %v1332 = vpow.pop %v1331
      %v1333 = vmul.f32 %v1328, 1.442695
      %v1334 = vpow.pop %v1333
      %v1335 = vadd.f32 %v1321, %v1330
      %v1336 = vadd.f32 %v1323, %v1332
      %v1337 = vadd.f32 %v1325, %v1334
      %v1338 = vrcp.pop %v1335
      %v1339 = vmul.f32 %v1335, %v1338
      %v1340 = vsub.f32 1.0, %v1339
      %v1341 = vmul.f32 %v1338, %v1340
      %v1342 = vadd.f32 %v1338, %v1341
      %vm1343 = vweird.f32 %v1335
      %vm1344 = vweird.f32 %v1338
      %vm1345 = vmor %vm1343, %vm1344
      %v1346 = vsel %vm1345, %v1338, %v1342
      %v1347 = vand.u32 2147483647, %v1335
      %vm1348 = vcmp.eq.f32.partialorder %v1347, 8.507059e+37
      %v1349 = vand.u32 %v1335, 2147483648
      %v1350 = vor.u32 1.1754944e-38, %v1349
      %v1351 = vsel %vm1348, %v1350, %v1346
      %v1352 = vmul.f32 1.0, %v1351
      %v1353 = vrcp.pop %v1336
      %v1354 = vmul.f32 %v1336, %v1353
      %v1355 = vsub.f32 1.0, %v1354
      %v1356 = vmul.f32 %v1353, %v1355
      %v1357 = vadd.f32 %v1353, %v1356
      %vm1358 = vweird.f32 %v1336
      %vm1359 = vweird.f32 %v1353
      %vm1360 = vmor %vm1358, %vm1359
      %v1361 = vsel %vm1360, %v1353, %v1357
      %v1362 = vand.u32 2147483647, %v1336
      %vm1363 = vcmp.eq.f32.partialorder %v1362, 8.507059e+37
      %v1364 = vand.u32 %v1336, 2147483648
      %v1365 = vor.u32 1.1754944e-38, %v1364
      %v1366 = vsel %vm1363, %v1365, %v1361
      %v1367 = vmul.f32 1.0, %v1366
      %v1368 = vrcp.pop %v1337
      %v1369 = vmul.f32 %v1337, %v1368
      %v1370 = vsub.f32 1.0, %v1369
      %v1371 = vmul.f32 %v1368, %v1370
      %v1372 = vadd.f32 %v1368, %v1371
      %vm1373 = vweird.f32 %v1337
      %vm1374 = vweird.f32 %v1368
      %vm1375 = vmor %vm1373, %vm1374
      %v1376 = vsel %vm1375, %v1368, %v1372
      %v1377 = vand.u32 2147483647, %v1337
      %vm1378 = vcmp.eq.f32.partialorder %v1377, 8.507059e+37
      %v1379 = vand.u32 %v1337, 2147483648
      %v1380 = vor.u32 1.1754944e-38, %v1379
      %v1381 = vsel %vm1378, %v1380, %v1376
      %v1382 = vmul.f32 1.0, %v1381
      %v1383 = vmul.f32 %v1321, %v1352
      %v1384 = vmul.f32 %v1323, %v1367
      %v1385 = vmul.f32 %v1325, %v1382
      %v1386 = vmul.f32 %v1383, %v913
      %v1387 = vmul.f32 %v1384, %v916
      %v1388 = vmul.f32 %v1385, %v919
      %v1389 = vmul.f32 %v1330, %v1352
      %v1390 = vmul.f32 %v1332, %v1367
      %v1391 = vmul.f32 %v1334, %v1382
      %v1392 = vmul.f32 %v1389, %v951
      %v1393 = vmul.f32 %v1390, %v954
      %v1394 = vmul.f32 %v1391, %v957
      %v1395 = vadd.f32 %v1386, %v1392
      %v1396 = vadd.f32 %v1387, %v1393
      %v1397 = vadd.f32 %v1388, %v1394
      %1401 = vrot.lane.b32.xlu0 %v1395, 112
      %v1402 = vpop.permute.xlu0 %1401
      %1403 = vrot.lane.b32.xlu0 %v1396, 112
      %v1404 = vpop.permute.xlu0 %1403
      %1405 = vrot.lane.b32.xlu0 %v1397, 112
      %v1406 = vpop.permute.xlu0 %1405
      %v1407 = vsel %vm970, %v1402, 0
      %v1409 = vsel %vm970, %v1404, 0
      %v1411 = vsel %vm970, %v1406, 0
      %1413 = vmatpush.msra.mxu0 0.0
      %1414 = vmatpush.msra.mxu0 0.0
      %1415 = vmatpush.msra.mxu0 0.0
      %1416 = vmatpush.msra.mxu0 0.0
      %1417 = vmatpush.msra.mxu0 0.0
      %1418 = vmatpush.msra.mxu0 0.0
      %1419 = vmatpush.msra.mxu0 0.0
      %1420 = vmatpush.msra.mxu0 0.0
      %1421 = vmatpush.msra.mxu0 0.0
      %1422 = vmatpush.msra.mxu0 0.0
      %1423 = vmatpush.msra.mxu0 0.0
      %1424 = vmatpush.msra.mxu0 0.0
      %1425 = vmatpush.msra.mxu0 0.0
      %1426 = vmatpush.msra.mxu0 0.0
      %1427 = vmatpush.msra.mxu0 %v962
      %1428 = vmatpush.msra.mxu0 %v961
      %1429 = vmatmul.f32.gmra.mxu0 %v1407
      %v1430 = vpop.f32.mrf.mxu0
      %v1431 = vadd.f32 0.0, %v1430
      %1432 = vmatmul.f32.gmra.mxu0 %v1409
      %v1433 = vpop.f32.mrf.mxu0
      %v1434 = vadd.f32 0.0, %v1433
      %1435 = vmatmul.f32.gmra.mxu0 %v1411
      %v1436 = vpop.f32.mrf.mxu0
      %v1437 = vadd.f32 0.0, %v1436
      %1438 = vdwg.mxu0
      %v1439 = vadd.f32 %v1258, %v1431
      %v1440 = vadd.f32 %v1261, %v1434
      %v1441 = vadd.f32 %v1264, %v1437
      %1445 = vrot.lane.b32.xlu0 %v1082, 112
      %v1446 = vpop.permute.xlu0 %1445
      %1447 = vrot.lane.b32.xlu0 %v1083, 112
      %v1448 = vpop.permute.xlu0 %1447
      %1449 = vrot.lane.b32.xlu0 %v1084, 112
      %v1450 = vpop.permute.xlu0 %1449
      %v1454 = vsel %vm970, %v1446, 0.0
      %1455 = vadd.xlane.f32.xlu0 %v1454
      %v1456 = vpop.xlane.xlu0 %1455
      %v1457 = vsel %vm970, %v1448, 0.0
      %1458 = vadd.xlane.f32.xlu0 %v1457
      %v1459 = vpop.xlane.xlu0 %1458
      %v1460 = vsel %vm970, %v1450, 0.0
      %1461 = vadd.xlane.f32.xlu0 %v1460
      %v1462 = vpop.xlane.xlu0 %1461
      %v1463 = vmul.f32 %v1456, 0.25
      %v1464 = vmul.f32 %v1459, 0.25
      %v1465 = vmul.f32 %v1462, 0.25
      %1469 = vrot.lane.b32.xlu0 %v1097, 112
      %v1470 = vpop.permute.xlu0 %1469
      %1471 = vrot.lane.b32.xlu0 %v1098, 112
      %v1472 = vpop.permute.xlu0 %1471
      %1473 = vrot.lane.b32.xlu0 %v1099, 112
      %v1474 = vpop.permute.xlu0 %1473
      %v1478 = vsel %vm970, %v1470, 0.0
      %1479 = vadd.xlane.f32.xlu0 %v1478
      %v1480 = vpop.xlane.xlu0 %1479
      %v1481 = vsel %vm970, %v1472, 0.0
      %1482 = vadd.xlane.f32.xlu0 %v1481
      %v1483 = vpop.xlane.xlu0 %1482
      %v1484 = vsel %vm970, %v1474, 0.0
      %1485 = vadd.xlane.f32.xlu0 %v1484
      %v1486 = vpop.xlane.xlu0 %1485
      %v1487 = vmul.f32 %v1480, 0.25
      %v1488 = vmul.f32 %v1483, 0.25
      %v1489 = vmul.f32 %v1486, 0.25
      %v1490 = vmax.f32 %v1463, %v1487
      %v1491 = vmax.f32 %v1464, %v1488
      %v1492 = vmax.f32 %v1465, %v1489
      %v1493 = vsub.f32 %v1463, %v1490
      %v1494 = vsub.f32 %v1464, %v1491
      %v1495 = vsub.f32 %v1465, %v1492
      %v1496 = vmul.f32 %v1493, 1.442695
      %v1497 = vpow.pop %v1496
      %v1498 = vmul.f32 %v1494, 1.442695
      %v1499 = vpow.pop %v1498
      %v1500 = vmul.f32 %v1495, 1.442695
      %v1501 = vpow.pop %v1500
      %v1502 = vsub.f32 %v1487, %v1490
      %v1503 = vsub.f32 %v1488, %v1491
      %v1504 = vsub.f32 %v1489, %v1492
      %v1505 = vmul.f32 %v1502, 1.442695
      %v1506 = vpow.pop %v1505
      %v1507 = vmul.f32 %v1503, 1.442695
      %v1508 = vpow.pop %v1507
      %v1509 = vmul.f32 %v1504, 1.442695
      %v1510 = vpow.pop %v1509
      %v1511 = vadd.f32 %v1497, %v1506
      %v1512 = vadd.f32 %v1499, %v1508
      %v1513 = vadd.f32 %v1501, %v1510
      %v1514 = vrcp.pop %v1511
      %v1515 = vmul.f32 %v1511, %v1514
      %v1516 = vsub.f32 1.0, %v1515
      %v1517 = vmul.f32 %v1514, %v1516
      %v1518 = vadd.f32 %v1514, %v1517
      %vm1519 = vweird.f32 %v1511
      %vm1520 = vweird.f32 %v1514
      %vm1521 = vmor %vm1519, %vm1520
      %v1522 = vsel %vm1521, %v1514, %v1518
      %v1523 = vand.u32 2147483647, %v1511
      %vm1524 = vcmp.eq.f32.partialorder %v1523, 8.507059e+37
      %v1525 = vand.u32 %v1511, 2147483648
      %v1526 = vor.u32 1.1754944e-38, %v1525
      %v1527 = vsel %vm1524, %v1526, %v1522
      %v1528 = vmul.f32 1.0, %v1527
      %v1529 = vrcp.pop %v1512
      %v1530 = vmul.f32 %v1512, %v1529
      %v1531 = vsub.f32 1.0, %v1530
      %v1532 = vmul.f32 %v1529, %v1531
      %v1533 = vadd.f32 %v1529, %v1532
      %vm1534 = vweird.f32 %v1512
      %vm1535 = vweird.f32 %v1529
      %vm1536 = vmor %vm1534, %vm1535
      %v1537 = vsel %vm1536, %v1529, %v1533
      %v1538 = vand.u32 2147483647, %v1512
      %vm1539 = vcmp.eq.f32.partialorder %v1538, 8.507059e+37
      %v1540 = vand.u32 %v1512, 2147483648
      %v1541 = vor.u32 1.1754944e-38, %v1540
      %v1542 = vsel %vm1539, %v1541, %v1537
      %v1543 = vmul.f32 1.0, %v1542
      %v1544 = vrcp.pop %v1513
      %v1545 = vmul.f32 %v1513, %v1544
      %v1546 = vsub.f32 1.0, %v1545
      %v1547 = vmul.f32 %v1544, %v1546
      %v1548 = vadd.f32 %v1544, %v1547
      %vm1549 = vweird.f32 %v1513
      %vm1550 = vweird.f32 %v1544
      %vm1551 = vmor %vm1549, %vm1550
      %v1552 = vsel %vm1551, %v1544, %v1548
      %v1553 = vand.u32 2147483647, %v1513
      %vm1554 = vcmp.eq.f32.partialorder %v1553, 8.507059e+37
      %v1555 = vand.u32 %v1513, 2147483648
      %v1556 = vor.u32 1.1754944e-38, %v1555
      %v1557 = vsel %vm1554, %v1556, %v1552
      %v1558 = vmul.f32 1.0, %v1557
      %v1559 = vmul.f32 %v1497, %v1528
      %v1560 = vmul.f32 %v1499, %v1543
      %v1561 = vmul.f32 %v1501, %v1558
      %v1562 = vmul.f32 %v1559, %v913
      %v1563 = vmul.f32 %v1560, %v916
      %v1564 = vmul.f32 %v1561, %v919
      %v1565 = vmul.f32 %v1506, %v1528
      %v1566 = vmul.f32 %v1508, %v1543
      %v1567 = vmul.f32 %v1510, %v1558
      %v1568 = vmul.f32 %v1565, %v951
      %v1569 = vmul.f32 %v1566, %v954
      %v1570 = vmul.f32 %v1567, %v957
      %v1571 = vadd.f32 %v1562, %v1568
      %v1572 = vadd.f32 %v1563, %v1569
      %v1573 = vadd.f32 %v1564, %v1570
      %1577 = vrot.lane.b32.xlu0 %v1571, 112
      %v1578 = vpop.permute.xlu0 %1577
      %1579 = vrot.lane.b32.xlu0 %v1572, 112
      %v1580 = vpop.permute.xlu0 %1579
      %1581 = vrot.lane.b32.xlu0 %v1573, 112
      %v1582 = vpop.permute.xlu0 %1581
      %v1583 = vsel %vm970, %v1578, 0
      %v1585 = vsel %vm970, %v1580, 0
      %v1587 = vsel %vm970, %v1582, 0
      %1589 = vmatpush.msra.mxu0 0.0
      %1590 = vmatpush.msra.mxu0 0.0
      %1591 = vmatpush.msra.mxu0 0.0
      %1592 = vmatpush.msra.mxu0 0.0
      %1593 = vmatpush.msra.mxu0 0.0
      %1594 = vmatpush.msra.mxu0 0.0
      %1595 = vmatpush.msra.mxu0 0.0
      %1596 = vmatpush.msra.mxu0 0.0
      %1597 = vmatpush.msra.mxu0 0.0
      %1598 = vmatpush.msra.mxu0 0.0
      %1599 = vmatpush.msra.mxu0 0.0
      %1600 = vmatpush.msra.mxu0 0.0
      %1601 = vmatpush.msra.mxu0 0.0
      %1602 = vmatpush.msra.mxu0 0.0
      %1603 = vmatpush.msra.mxu0 %v966
      %1604 = vmatpush.msra.mxu0 %v965
      %1605 = vmatmul.f32.gmra.mxu0 %v1583
      %v1606 = vpop.f32.mrf.mxu0
      %v1607 = vadd.f32 0.0, %v1606
      %1608 = vmatmul.f32.gmra.mxu0 %v1585
      %v1609 = vpop.f32.mrf.mxu0
      %v1610 = vadd.f32 0.0, %v1609
      %1611 = vmatmul.f32.gmra.mxu0 %v1587
      %v1612 = vpop.f32.mrf.mxu0
      %v1613 = vadd.f32 0.0, %v1612
      %1614 = vdwg.mxu0
      %v1615 = vadd.f32 %v1439, %v1607
      %v1616 = vadd.f32 %v1440, %v1610
      %v1617 = vadd.f32 %v1441, %v1613
      %v1618 = vperm.slane %v444, 3
      %v1619 = vadd.f32 %v1615, %v1618
      %v1620 = vadd.f32 %v1616, %v1618
      %v1621 = vadd.f32 %v1617, %v1618
      %v1622 = vsel %vm497, %v1619, 0.0
      %1623 = vadd.xlane.f32.xlu0 %v1622
      %v1624 = vpop.xlane.xlu0 %1623
      %v1625 = vsel %vm497, %v1620, 0.0
      %1626 = vadd.xlane.f32.xlu0 %v1625
      %v1627 = vpop.xlane.xlu0 %1626
      %v1628 = vsel %vm497, %v1621, 0.0
      %1629 = vadd.xlane.f32.xlu0 %v1628
      %v1630 = vpop.xlane.xlu0 %1629
      %v1631 = vmul.f32 %v1624, %v513
      %v1632 = vmul.f32 %v1627, %v513
      %v1633 = vmul.f32 %v1630, %v513
      %v1634 = vsub.f32 %v1619, %v1631
      %v1635 = vsub.f32 %v1620, %v1632
      %v1636 = vsub.f32 %v1621, %v1633
      %v1637 = vmul.f32 %v1634, %v1634
      %v1638 = vmul.f32 %v1635, %v1635
      %v1639 = vmul.f32 %v1636, %v1636
      %v1640 = vsel %vm497, %v1637, 0.0
      %1641 = vadd.xlane.f32.xlu0 %v1640
      %v1642 = vpop.xlane.xlu0 %1641
      %v1643 = vsel %vm497, %v1638, 0.0
      %1644 = vadd.xlane.f32.xlu0 %v1643
      %v1645 = vpop.xlane.xlu0 %1644
      %v1646 = vsel %vm497, %v1639, 0.0
      %1647 = vadd.xlane.f32.xlu0 %v1646
      %v1648 = vpop.xlane.xlu0 %1647
      %v1649 = vmul.f32 %v1642, %v513
      %v1650 = vmul.f32 %v1645, %v513
      %v1651 = vmul.f32 %v1648, %v513
      %v1652 = vadd.f32 %v1649, 1e-05
      %v1653 = vadd.f32 %v1650, 1e-05
      %v1654 = vadd.f32 %v1651, 1e-05
      %v1655 = vrsqrt.pop %v1652
      %v1656 = vmul.f32 %v1655, %v1652
      %v1657 = vmul.f32 %v1656, %v1655
      %v1658 = vmul.f32 0.5, %v1657
      %v1659 = vsub.f32 1.5, %v1658
      %v1660 = vmul.f32 %v1655, %v1659
      %vm1661 = vweird.f32 %v1652
      %vm1662 = vweird.f32 %v1655
      %vm1663 = vmor %vm1661, %vm1662
      %v1664 = vsel %vm1663, %v1655, %v1660
      %v1665 = vrsqrt.pop %v1653
      %v1666 = vmul.f32 %v1665, %v1653
      %v1667 = vmul.f32 %v1666, %v1665
      %v1668 = vmul.f32 0.5, %v1667
      %v1669 = vsub.f32 1.5, %v1668
      %v1670 = vmul.f32 %v1665, %v1669
      %vm1671 = vweird.f32 %v1653
      %vm1672 = vweird.f32 %v1665
      %vm1673 = vmor %vm1671, %vm1672
      %v1674 = vsel %vm1673, %v1665, %v1670
      %v1675 = vrsqrt.pop %v1654
      %v1676 = vmul.f32 %v1675, %v1654
      %v1677 = vmul.f32 %v1676, %v1675
      %v1678 = vmul.f32 0.5, %v1677
      %v1679 = vsub.f32 1.5, %v1678
      %v1680 = vmul.f32 %v1675, %v1679
      %vm1681 = vweird.f32 %v1654
      %vm1682 = vweird.f32 %v1675
      %vm1683 = vmor %vm1681, %vm1682
      %v1684 = vsel %vm1683, %v1675, %v1680
      %v1685 = vmul.f32 %v1634, %v1664
      %v1686 = vmul.f32 %v1635, %v1674
      %v1687 = vmul.f32 %v1636, %v1684
      %v1688 = vperm.slane %v444, 4
      %v1689 = vmul.f32 %v1685, %v1688
      %v1690 = vmul.f32 %v1686, %v1688
      %v1691 = vmul.f32 %v1687, %v1688
      %v1692 = vperm.slane %v444, 5
      %v1693 = vadd.f32 %v1689, %v1692
      %v1694 = vadd.f32 %v1690, %v1692
      %v1695 = vadd.f32 %v1691, %v1692
      %1696 = vst.msk [vmem:[%s442] sm:$0xff] %vm497, %v1693
      %1697 = vst.msk [vmem:[%s442 + $0x8] sm:$0xff] %vm497, %v1694
      %1698 = vst.msk [vmem:[%s442 + $0x10] sm:$0xff] %vm497, %v1695
      %s1699 = smul.u32 3, %s19
      %p1700 = scmp.lt.s32.totalorder %s1699, 5
      %s1701 = scalar_select %p1700, %s1699, 5
      %s1702 = smul.addr %s1701, 8
      %s1703 = scalar_lea.vmem %s8, %s1702
      // Predicated region
      $region53: #{encoder_for_pp.1} parent=51 // pred_check
        %p1704 = pneg %p245
      $region54: #{encoder_for_pp.1} parent=51 // pred_check_branch
        %1706 = sbr.rel (%p1704) target = $region56
      $region55: #{encoder_for_pp.1} parent=51 // pred_region
        %s1707 = smul.u32 3, %s19
      $region56: #{encoder_for_pp.1} parent=51 // pred_fallthru
        _
    $region52: #{encoder_for_pp.1} parent=5 // pred_fallthru
      _
    %p1708 = scmp.le.s32.totalorder 2, %s14
    // Predicated region
    $region57: #{encoder_for_pp.1} parent=5 // pred_check
      %p1709 = pneg %p1708
    $region58: #{encoder_for_pp.1} parent=5 // pred_check_branch
      %1711 = sbr.rel (%p1709) target = $region60
    $region59: #{encoder_for_pp.1} parent=5 // pred_region
      %s1712 = ssub.s32 %s14, 2
      // Predicated region
      $region61: #{encoder_for_pp.1} parent=59 // pred_check
        %p1713 = pneg %p251
      $region62: #{encoder_for_pp.1} parent=59 // pred_check_branch
        %1715 = sbr.rel (%p1713) target = $region64
      $region63: #{encoder_for_pp.1} parent=59 // pred_region
        %s1716 = smul.u32 3, %s20
        %p1717 = scmp.lt.s32.totalorder %s1716, 5
        %s1718 = scalar_select %p1717, %s1716, 5
        %s1719 = smul.addr %s1718, 8
        %s1720 = scalar_lea.vmem %s8, %s1719
      $region64: #{encoder_for_pp.1} parent=59 // pred_fallthru
        _
    $region60: #{encoder_for_pp.1} parent=5 // pred_fallthru
      _
  $region6: #{encoder_for_pp.1} parent=0 // loop_footer
    %s18 = sadd.s32 1, %s14
  $region7: #{encoder_for_pp.1} parent=0 // loop_footer_branch
    %13 = sbr.rel target = $region3
  $region8: #{encoder_for_pp.1} parent=0 // loop_exit
    _

</llo_original>
